<compile_context>
chip_gen: v7x
topology: tpu7x:2x2x1
jax: 0.10.0
libtpu: 0.0.40
codegen_flags: <defaults>
</compile_context>

<pallas_src>
import jax
import jax.numpy as jnp
from jax.experimental import pallas as pl
from jax.experimental.pallas import tpu as pltpu


def _self_attention_kernel(x_ref, mask_ref, wt_ref, b_ref, u_ref, o_ref):
    # x_ref:    (TB, S, K)  batch tile of the input (S already padded to %8==0)
    # mask_ref: (TB, S)     1.0 where valid, 0.0 where padded
    # wt_ref:   (K, K)      pre-transposed Linear weight (h = x @ Wt + b)
    # b_ref:    (1, K)      Linear bias (row)
    # u_ref:    (1, K)      U_weight reshaped to a row
    # o_ref:    (TB, K)     output tile
    TB, S, K = x_ref.shape
    inv_sqrt_k = 1.0 / float(K) ** 0.5

    x = x_ref[...]                                            # (TB, S, K)

    # --- W_layer: Linear + Tanh, flattened so the MXU sees (TB*S, K)x(K, K) ---
    # (relayout-free: the wrapper guarantees S % 8 == 0)
    x2 = x.reshape(TB * S, K)
    h = jnp.tanh(
        jnp.dot(x2, wt_ref[...], preferred_element_type=jnp.float32)
        + b_ref[...]
    ).reshape(TB, S, K)                                       # (TB, S, K)

    # --- attention logits: broadcast-multiply by U row + lane reduce over K ---
    score = jnp.sum(h * u_ref[...], axis=-1)                  # (TB, S), S on lanes

    # --- masking: mask == False -> -2**31 + 1 (matches PyTorch) ---
    neg_pad = jnp.float32(-(2 ** 31) + 1)
    score = jnp.where(mask_ref[...] != 0.0, score, neg_pad)   # (TB, S)

    # --- softmax over the sequence axis, 1/sqrt(K) folded into the norm ---
    score = score - jnp.max(score, axis=-1, keepdims=True)
    e = jnp.exp(score)
    inv_l = pl.reciprocal(jnp.sum(e, axis=-1, keepdims=True), approx=True)
    p = e * (inv_l * inv_sqrt_k)                              # (TB, S)

    # --- weighted pooling: MXU contraction over S, no relayout of p ---
    pooled = jnp.einsum(
        "bqs,bsk->bqk", p[:, None, :], x,
        preferred_element_type=jnp.float32,
    )                                                         # (TB, 1, K)
    o_ref[...] = pooled.reshape(TB, K)


def _pick_tb(B, S, K, vmem_budget_bytes=24 << 20):
    """Size the batch tile from bytes moved per step.

    * Largest divisor of B whose double-buffered tile fits the VMEM budget
      -> fewest grid steps (each step costs ~0.35 us of pipeline overhead).
      grid=(1,) is allowed when the whole batch fits.
    * Only split into >=2 steps (megacore) when a single step would move more
      than a few MiB of input, i.e. per-step work >> the fixed step overhead.
    * Keep tb a multiple of 8 (sublane tile) unless tb == B, so 2-D blocks
      like (tb, S) / (tb, K) satisfy the (8, 128) tiling constraint.
    """
    bytes_per_row = (S * K + S + K) * 4          # input + mask + out, per batch row
    fixed = 2 * (K * K + 2 * K) * 4              # W^T, bias, U (double-buffered)
    cap = max(1, (vmem_budget_bytes - fixed) // (2 * bytes_per_row))

    divisors = [d for d in range(1, B + 1) if B % d == 0]
    fitting = [d for d in divisors if d <= cap and (d == B or d % 8 == 0)]
    if not fitting:                              # huge rows: fall back to any divisor
        fitting = [d for d in divisors if d <= cap] or [min(divisors)]
    tb = max(fitting)

    # Megacore split only when one step would carry several MiB of input.
    single_step_bytes = B * S * K * 4
    if tb == B and B > 1 and single_step_bytes > (4 << 20):
        split = [d for d in fitting if d < B]
        if split:
            tb = max(split)
    return tb


def self_attention_pallas(x, mask, W, b, U, tb=None):
    """x: (B, S, K) f32, mask: (B, S) bool, W: (K, K), b: (K,), U: (K, 1)."""
    B, S, K = x.shape

    # Pad S to a multiple of 8 so the in-kernel (TB,S,K)<->(TB*S,K) reshape is
    # relayout-free.  Padded positions: mask=False (softmax weight -> 0) and
    # x=0 (finite), so the result is unchanged.
    S_pad = -(-S // 8) * 8
    mask_f = mask.astype(jnp.float32)            # (B, S), lane-dense
    if S_pad != S:
        x = jnp.pad(x, ((0, 0), (0, S_pad - S), (0, 0)))
        mask_f = jnp.pad(mask_f, ((0, 0), (0, S_pad - S)))

    if tb is None:
        tb = _pick_tb(B, S_pad, K)
    assert B % tb == 0, f"batch {B} must be divisible by tile {tb}"

    Wt = W.T                                     # hoist transpose out of the kernel
    b_row = b.reshape(1, K)
    u_row = U.reshape(1, K)

    cost = pl.CostEstimate(
        flops=2 * B * S_pad * K * K + 2 * B * S_pad * K + 6 * B * S_pad * K,
        transcendentals=B * S_pad * K + B * S_pad,             # tanh + exp
        bytes_accessed=4 * (B * S_pad * K + B * S_pad + K * K + 2 * K + B * K),
    )

    out = pl.pallas_call(
        _self_attention_kernel,
        out_shape=jax.ShapeDtypeStruct((B, K), jnp.float32),
        grid_spec=pltpu.PrefetchScalarGridSpec(
            num_scalar_prefetch=0,
            grid=(B // tb,),
            in_specs=[
                pl.BlockSpec((tb, S_pad, K), lambda i: (i, 0, 0)),  # input tile
                pl.BlockSpec((tb, S_pad), lambda i: (i, 0)),        # mask tile
                pl.BlockSpec((K, K), lambda i: (0, 0)),             # W^T (invariant)
                pl.BlockSpec((1, K), lambda i: (0, 0)),             # bias row
                pl.BlockSpec((1, K), lambda i: (0, 0)),             # U row
            ],
            out_specs=pl.BlockSpec((tb, K), lambda i: (i, 0)),      # output tile
        ),
        compiler_params=pltpu.CompilerParams(
            dimension_semantics=("parallel",),
            vmem_limit_bytes=32 << 20,            # safe on v5e/v6e/v7x
        ),
        cost_estimate=cost,
    )(x, mask_f, Wt, b_row, u_row)
    return out


def self_attention_ref(x, mask, W, b, U):
    """Plain-JAX reference mirroring the PyTorch forward exactly."""
    h = jnp.tanh(jnp.einsum("bsk,jk->bsj", x, W) + b)          # (B, S, K)
    score = jnp.einsum("bsk,kl->bsl", h, U)                    # (B, S, 1)
    m = mask[..., None]                                        # (B, S, 1)
    padding = jnp.full_like(score, jnp.float32(-(2 ** 31) + 1))
    score = jnp.where(~m, padding, score)
    score = jax.nn.softmax(score, axis=1)
    out = jnp.einsum("bks,bsl->bkl", jnp.swapaxes(x, 1, 2), score)  # (B, K, 1)
    out = out / jnp.sqrt(jnp.float32(x.shape[-1]))
    return out[..., 0]                                         # (B, K)


if __name__ == "__main__":
    B, S, K = 16, 8, 32
    key = jax.random.PRNGKey(0)
    kx, kw, kb, ku = jax.random.split(key, 4)

    x = jax.random.normal(kx, (B, S, K), dtype=jnp.float32)
    # valid lengths per batch element (varying, all >= 1)
    lengths = (jnp.arange(B, dtype=jnp.int32) % S) + 1
    mask = jnp.arange(S)[None, :] < lengths[:, None]           # (B, S) bool

    # deterministic parameter init (mirrors nn.Linear / nn.Parameter shapes)
    W = jax.random.normal(kw, (K, K), dtype=jnp.float32) * 0.1
    b = jax.random.normal(kb, (K,), dtype=jnp.float32) * 0.1
    U = jax.random.normal(ku, (K, 1), dtype=jnp.float32)

    out = self_attention_pallas(x, mask, W, b, U)
    jax.block_until_ready(out)

    ref = self_attention_ref(x, mask, W, b, U)
    assert out.shape == (B, K)
    # tolerance accounts for the approx (EUP) reciprocal in the softmax denom
    assert jnp.allclose(out, ref, atol=1e-3, rtol=1e-3), (
        f"max abs err = {jnp.max(jnp.abs(out - ref))}"
    )
    print("KERNEL_OK")
</pallas_src>

<mosaic_0001>
module attributes {stable_mosaic.version = 11 : i64} {
  func.func @_self_attention_kernel(%arg0: i32, %arg1: memref<16x8x32xf32, #tpu.memory_space<vmem>>, %arg2: memref<16x8xf32, #tpu.memory_space<vmem>>, %arg3: memref<32x32xf32, #tpu.memory_space<vmem>>, %arg4: memref<1x32xf32, #tpu.memory_space<vmem>>, %arg5: memref<1x32xf32, #tpu.memory_space<vmem>>, %arg6: memref<16x32xf32, #tpu.memory_space<vmem>>) attributes {dimension_semantics = [#tpu.dimension_semantics<parallel>], iteration_bounds = array<i64: 1>, scalar_prefetch = 0 : i64, scratch_operands = 0 : i64, tpu.core_type = #tpu.core_type<tc>, window_params = [{transform_indices = @transform_0, window_bounds = array<i64: 16, 8, 32>}, {transform_indices = @transform_1, window_bounds = array<i64: 16, 8>}, {pipeline_mode = #tpu.pipeline_mode<synchronous>, transform_indices = @transform_2, window_bounds = array<i64: 32, 32>}, {pipeline_mode = #tpu.pipeline_mode<synchronous>, transform_indices = @transform_3, window_bounds = array<i64: 1, 32>}, {pipeline_mode = #tpu.pipeline_mode<synchronous>, transform_indices = @transform_4, window_bounds = array<i64: 1, 32>}, {transform_indices = @transform_5, window_bounds = array<i64: 16, 32>}]} {
    %c0 = arith.constant 0 : index
    %c0_0 = arith.constant 0 : index
    %c0_1 = arith.constant 0 : index
    %0 = vector.load %arg1[%c0, %c0_0, %c0_1] : memref<16x8x32xf32, #tpu.memory_space<vmem>>, vector<16x8x32xf32>
    %1 = vector.shape_cast %0 : vector<16x8x32xf32> to vector<128x32xf32>
    %c0_2 = arith.constant 0 : index
    %c0_3 = arith.constant 0 : index
    %2 = vector.load %arg3[%c0_2, %c0_3] : memref<32x32xf32, #tpu.memory_space<vmem>>, vector<32x32xf32>
    %cst = arith.constant dense<0.000000e+00> : vector<128x32xf32>
    %3 = tpu.matmul %1, %2, %cst {dimension_numbers = #tpu.dot_dimension_numbers<[1], [0], [0], [1], [0, 0, 1, 1], [], []>} : vector<128x32xf32>, vector<32x32xf32>, vector<128x32xf32> -> vector<128x32xf32>
    %c0_4 = arith.constant 0 : index
    %c0_5 = arith.constant 0 : index
    %4 = vector.load %arg4[%c0_4, %c0_5] : memref<1x32xf32, #tpu.memory_space<vmem>>, vector<1x32xf32>
    %5 = vector.broadcast %4 : vector<1x32xf32> to vector<128x32xf32>
    %6 = arith.addf %3, %5 : vector<128x32xf32>
    %7 = math.tanh %6 : vector<128x32xf32>
    %8 = vector.shape_cast %7 : vector<128x32xf32> to vector<16x8x32xf32>
    %c0_6 = arith.constant 0 : index
    %c0_7 = arith.constant 0 : index
    %9 = vector.load %arg5[%c0_6, %c0_7] : memref<1x32xf32, #tpu.memory_space<vmem>>, vector<1x32xf32>
    %10 = vector.shape_cast %9 : vector<1x32xf32> to vector<1x1x32xf32>
    %11 = vector.broadcast %10 : vector<1x1x32xf32> to vector<16x8x32xf32>
    %12 = arith.mulf %8, %11 : vector<16x8x32xf32>
    %cst_8 = arith.constant dense<0.000000e+00> : vector<16x8xf32>
    %13 = vector.multi_reduction <add>, %12, %cst_8 [2] : vector<16x8x32xf32> to vector<16x8xf32>
    %c0_9 = arith.constant 0 : index
    %c0_10 = arith.constant 0 : index
    %14 = vector.load %arg2[%c0_9, %c0_10] : memref<16x8xf32, #tpu.memory_space<vmem>>, vector<16x8xf32>
    %cst_11 = arith.constant 0.000000e+00 : f32
    %15 = vector.broadcast %cst_11 : f32 to vector<16x8xf32>
    %16 = arith.cmpf one, %14, %15 : vector<16x8xf32>
    %cst_12 = arith.constant -2.14748365E+9 : f32
    %17 = vector.broadcast %cst_12 : f32 to vector<16x8xf32>
    %18 = arith.select %16, %13, %17 : vector<16x8xi1>, vector<16x8xf32>
    %cst_13 = arith.constant dense<0xFF800000> : vector<16xf32>
    %19 = vector.multi_reduction <maximumf>, %18, %cst_13 [1] : vector<16x8xf32> to vector<16xf32>
    %20 = vector.shape_cast %19 : vector<16xf32> to vector<16x1xf32>
    %21 = vector.broadcast %20 : vector<16x1xf32> to vector<16x8xf32>
    %22 = arith.subf %18, %21 : vector<16x8xf32>
    %23 = math.exp %22 : vector<16x8xf32>
    %cst_14 = arith.constant dense<0.000000e+00> : vector<16xf32>
    %24 = vector.multi_reduction <add>, %23, %cst_14 [1] : vector<16x8xf32> to vector<16xf32>
    %25 = vector.shape_cast %24 : vector<16xf32> to vector<16x1xf32>
    %26 = tpu.reciprocal %25 {approx = true} : vector<16x1xf32> -> vector<16x1xf32>
    %cst_15 = arith.constant 0.176776692 : f32
    %27 = vector.broadcast %cst_15 : f32 to vector<16x1xf32>
    %28 = arith.mulf %26, %27 : vector<16x1xf32>
    %29 = vector.broadcast %28 : vector<16x1xf32> to vector<16x8xf32>
    %30 = arith.mulf %23, %29 : vector<16x8xf32>
    %31 = vector.shape_cast %30 : vector<16x8xf32> to vector<16x1x8xf32>
    "tpu.trace_start"() <{level = 10 : i32, message = "bqs,bsk->bqk"}> : () -> ()
    %cst_16 = arith.constant dense<0.000000e+00> : vector<16x1x32xf32>
    %32 = tpu.matmul %31, %0, %cst_16 {dimension_numbers = #tpu.dot_dimension_numbers<[2], [1], [1], [2], [0, 0, 0, 1, 1, 2], [0], [0]>} : vector<16x1x8xf32>, vector<16x8x32xf32>, vector<16x1x32xf32> -> vector<16x1x32xf32>
    "tpu.trace_stop"() : () -> ()
    %33 = vector.shape_cast %32 : vector<16x1x32xf32> to vector<16x32xf32>
    %c0_17 = arith.constant 0 : index
    %c0_18 = arith.constant 0 : index
    %34 = vector.load %arg6[%c0_17, %c0_18] : memref<16x32xf32, #tpu.memory_space<vmem>>, vector<16x32xf32>
    tpu.vector_store %arg6[%c0_17, %c0_18], %33 {strides = array<i32>} : memref<16x32xf32, #tpu.memory_space<vmem>>, vector<16x32xf32>,
    return
  }
  func.func @transform_0(%arg0: i32) -> (i32, i32, i32) {
    %c0_i32 = arith.constant 0 : i32
    %c0_i32_0 = arith.constant 0 : i32
    %c0_i32_1 = arith.constant 0 : i32
    return %arg0, %c0_i32, %c0_i32_0 : i32, i32, i32
  }
  func.func @transform_1(%arg0: i32) -> (i32, i32) {
    %c0_i32 = arith.constant 0 : i32
    %c0_i32_0 = arith.constant 0 : i32
    return %arg0, %c0_i32 : i32, i32
  }
  func.func @transform_2(%arg0: i32) -> (i32, i32) {
    %c0_i32 = arith.constant 0 : i32
    %c0_i32_0 = arith.constant 0 : i32
    %c0_i32_1 = arith.constant 0 : i32
    return %c0_i32, %c0_i32_0 : i32, i32
  }
  func.func @transform_3(%arg0: i32) -> (i32, i32) {
    %c0_i32 = arith.constant 0 : i32
    %c0_i32_0 = arith.constant 0 : i32
    %c0_i32_1 = arith.constant 0 : i32
    return %c0_i32, %c0_i32_0 : i32, i32
  }
  func.func @transform_4(%arg0: i32) -> (i32, i32) {
    %c0_i32 = arith.constant 0 : i32
    %c0_i32_0 = arith.constant 0 : i32
    %c0_i32_1 = arith.constant 0 : i32
    return %c0_i32, %c0_i32_0 : i32, i32
  }
  func.func @transform_5(%arg0: i32) -> (i32, i32) {
    %c0_i32 = arith.constant 0 : i32
    %c0_i32_0 = arith.constant 0 : i32
    return %arg0, %c0_i32 : i32, i32
  }
}

</mosaic_0001>

<llo_original>
// kernel: tpu_custom_call.1
$region0: #{tpu_custom_call.1}
  #allocation0 [shape = 'u32[]', space=smem, size = 0x4, offset = 0x4, fixed_abs, tag = 'smem constant byte address 0x4 - core index']
  #allocation1 [shape = 'u32[144,128]{1,0:T(1,128)}', space=vmem, size = 0x12000, scoped, tag = 'internal scratch']
  %s0 = inlined_call_operand.hbm [shape: f32[16,8,32], index: 0, kind: input, shape index: {}]
  %s1 = inlined_call_operand.vmem [shape: f32[16,8], index: 1, kind: input, shape index: {}]
  %s2 = inlined_call_operand.hbm [shape: f32[32,32], index: 2, kind: input, shape index: {}]
  %s3 = inlined_call_operand.vmem [shape: f32[1,32], index: 3, kind: input, shape index: {}]
  %s4 = inlined_call_operand.vmem [shape: f32[1,32], index: 4, kind: input, shape index: {}]
  %s5 = inlined_call_operand.hbm [shape: f32[16,32], index: 5, kind: output, shape index: {}]
  %s6 = sld [smem:[#allocation0]]
  $region38: #{tpu_custom_call.1} parent=0
    _
  %s8 = ssub.s32 1, %s6
  %s9 = scalar_select 0, %s8, %s6
  $region1: #{tpu_custom_call.1} parent=0
    #allocation2 [shape = 'u8[65536]{0}', space=vmem, size = 0x10000, scoped, tag = 'input window, operand 0, single buffered']
    #allocation3 [shape = 's32[1]{0}', space=sflag, size = 0x4, scoped, tag = 'scoped memory for tpu_custom_call.1']
    #allocation4 [shape = 's32[1]{0}', space=sflag, size = 0x4, scoped, tag = 'scoped memory for tpu_custom_call.1']
    #allocation5 [shape = 'u8[16384]{0}', space=vmem, size = 0x4000, scoped, tag = 'input window, operand 2, single buffered']
    #allocation6 [shape = 's32[1]{0}', space=sflag, size = 0x4, scoped, tag = 'scoped memory for tpu_custom_call.1']
    #allocation7 [shape = 'u8[8192]{0}', space=vmem, size = 0x2000, scoped, tag = 'output window, operand 0, single buffered']
    %10 = vsyncpa [#allocation3], 0
    %11 = vsyncpa [#allocation6], 0
    %12 = vsyncpa [#allocation4], 0
    // Predicated region
    $region2: #{tpu_custom_call.1} parent=1 // pred_check
      _
    $region3: #{tpu_custom_call.1} parent=1 // pred_check_branch
      %14 = sbr.rel (0) target = $region5
    $region4: #{tpu_custom_call.1} parent=1 // pred_region
      %s16 = ssub.s32 2048, 2048
      %17 = vsyncadd [#allocation3], %s16
      %s18 = sshll.u32 [#allocation2], 4
      %s19 = int_to_ptr.vmem [resolvable:$true] %s18
      %24 = dma.hbm_to_vmem [thread:$0]  %s0, 2048, %s19, [#allocation3], 128, 128, 8
    $region5: #{tpu_custom_call.1} parent=1 // pred_fallthru
      _
    // Predicated region
    $region6: #{tpu_custom_call.1} parent=1 // pred_check
      _
    $region7: #{tpu_custom_call.1} parent=1 // pred_check_branch
      %26 = sbr.rel (0) target = $region9
    $region8: #{tpu_custom_call.1} parent=1 // pred_region
      _
    $region9: #{tpu_custom_call.1} parent=1 // pred_fallthru
      _
    // Predicated region
    $region10: #{tpu_custom_call.1} parent=1 // pred_check
      _
    $region11: #{tpu_custom_call.1} parent=1 // pred_check_branch
      %28 = sbr.rel (0) target = $region13
    $region12: #{tpu_custom_call.1} parent=1 // pred_region
      %s30 = ssub.s32 512, 512
      %31 = vsyncadd [#allocation6], %s30
      %s32 = sshll.u32 [#allocation5], 4
      %s33 = int_to_ptr.vmem [resolvable:$true] %s32
      %38 = dma.hbm_to_vmem [thread:$0]  %s2, 512, %s33, [#allocation6], 128, 128, 8
    $region13: #{tpu_custom_call.1} parent=1 // pred_fallthru
      _
    // Predicated region
    $region14: #{tpu_custom_call.1} parent=1 // pred_check
      _
    $region15: #{tpu_custom_call.1} parent=1 // pred_check_branch
      %40 = sbr.rel (0) target = $region17
    $region16: #{tpu_custom_call.1} parent=1 // pred_region
      _
    $region17: #{tpu_custom_call.1} parent=1 // pred_fallthru
      _
    // Predicated region
    $region18: #{tpu_custom_call.1} parent=1 // pred_check
      _
    $region19: #{tpu_custom_call.1} parent=1 // pred_check_branch
      %42 = sbr.rel (0) target = $region21
    $region20: #{tpu_custom_call.1} parent=1 // pred_region
      _
    $region21: #{tpu_custom_call.1} parent=1 // pred_fallthru
      _
    // Predicated region
    $region22: #{tpu_custom_call.1} parent=1 // pred_check
      _
    $region23: #{tpu_custom_call.1} parent=1 // pred_check_branch
      %44 = sbr.rel (0) target = $region25
    $region24: #{tpu_custom_call.1} parent=1 // pred_region
      %45 = dma.done [#allocation3], 2048
    $region25: #{tpu_custom_call.1} parent=1 // pred_fallthru
      _
    // Predicated region
    $region26: #{tpu_custom_call.1} parent=1 // pred_check
      _
    $region27: #{tpu_custom_call.1} parent=1 // pred_check_branch
      %47 = sbr.rel (0) target = $region29
    $region28: #{tpu_custom_call.1} parent=1 // pred_region
      %48 = dma.done [#allocation6], 512
    $region29: #{tpu_custom_call.1} parent=1 // pred_fallthru
      _
    %v49 = vld [vmem:[#allocation2] sm:$0xff]
    %v50 = vld [vmem:[#allocation2 + $0x8] sm:$0xff]
    %v51 = vld [vmem:[#allocation2 + $0x10] sm:$0xff]
    %v52 = vld [vmem:[#allocation2 + $0x18] sm:$0xff]
    %v53 = vld [vmem:[#allocation2 + $0x20] sm:$0xff]
    %v54 = vld [vmem:[#allocation2 + $0x28] sm:$0xff]
    %v55 = vld [vmem:[#allocation2 + $0x30] sm:$0xff]
    %v56 = vld [vmem:[#allocation2 + $0x38] sm:$0xff]
    %v57 = vld [vmem:[#allocation2 + $0x40] sm:$0xff]
    %v58 = vld [vmem:[#allocation2 + $0x48] sm:$0xff]
    %v59 = vld [vmem:[#allocation2 + $0x50] sm:$0xff]
    %v60 = vld [vmem:[#allocation2 + $0x58] sm:$0xff]
    %v61 = vld [vmem:[#allocation2 + $0x60] sm:$0xff]
    %v62 = vld [vmem:[#allocation2 + $0x68] sm:$0xff]
    %v63 = vld [vmem:[#allocation2 + $0x70] sm:$0xff]
    %v64 = vld [vmem:[#allocation2 + $0x78] sm:$0xff]
    %v65 = vld [vmem:[#allocation5] sm:$0xff]
    %v66 = vld [vmem:[#allocation5 + $0x8] sm:$0xff]
    %v67 = vld [vmem:[#allocation5 + $0x10] sm:$0xff]
    %v68 = vld [vmem:[#allocation5 + $0x18] sm:$0xff]
    %v69 = vld [vmem:[%s3] sm:$0x1]
    %v71 = vlaneseq
    %v72 = vshrl.u32 %v71, 7
    %v73 = vsub.s32 0, %v72
    %v74 = vrot.slane %v69, %v73
    %vm76 = vcmask 261120
    %v78 = vsel %vm76, %v49, 0
    %v81 = vsel %vm76, %v50, 0
    %v84 = vsel %vm76, %v51, 0
    %v87 = vsel %vm76, %v52, 0
    %v90 = vsel %vm76, %v53, 0
    %v93 = vsel %vm76, %v54, 0
    %v96 = vsel %vm76, %v55, 0
    %v99 = vsel %vm76, %v56, 0
    %v102 = vsel %vm76, %v57, 0
    %v105 = vsel %vm76, %v58, 0
    %v108 = vsel %vm76, %v59, 0
    %v111 = vsel %vm76, %v60, 0
    %v114 = vsel %vm76, %v61, 0
    %v117 = vsel %vm76, %v62, 0
    %v120 = vsel %vm76, %v63, 0
    %v123 = vsel %vm76, %v64, 0
    %125 = vmatprep.subr.mxu0 0.0
    %126 = vmatpush1.msra.mxu0 %v65
    %127 = vmatprep.subr.mxu0 0.0
    %128 = vmatpush1.msra.mxu0 %v66
    %129 = vmatprep.subr.mxu0 0.0
    %130 = vmatpush1.msra.mxu0 %v67
    %131 = vmatprep.subr.mxu0 0.0
    %132 = vmatpush1.msra.mxu0 %v68
    %133 = vmatprep.subr.mxu0 0.0
    %134 = vmatpush1.msra.mxu0 0.0
    %135 = vmatprep.subr.mxu0 0.0
    %136 = vmatpush1.msra.mxu0 0.0
    %137 = vmatprep.subr.mxu0 0.0
    %138 = vmatpush1.msra.mxu0 0.0
    %139 = vmatprep.subr.mxu0 0.0
    %140 = vmatpush1.msra.mxu0 0.0
    %141 = vmatprep.subr.mxu0 0.0
    %142 = vmatpush1.msra.mxu0 0.0
    %143 = vmatprep.subr.mxu0 0.0
    %144 = vmatpush1.msra.mxu0 0.0
    %145 = vmatprep.subr.mxu0 0.0
    %146 = vmatpush1.msra.mxu0 0.0
    %147 = vmatprep.subr.mxu0 0.0
    %148 = vmatpush1.msra.mxu0 0.0
    %149 = vmatprep.subr.mxu0 0.0
    %150 = vmatpush1.msra.mxu0 0.0
    %151 = vmatprep.subr.mxu0 0.0
    %152 = vmatpush1.msra.mxu0 0.0
    %153 = vmatprep.subr.mxu0 0.0
    %154 = vmatpush1.msra.mxu0 0.0
    %155 = vmatprep.subr.mxu0 0.0
    %156 = vmatpush1.msra.mxu0 0.0
    %157 = vmatprep.subr.mxu0 0.0
    %158 = vmatpush1.msra.mxu0 0.0
    %159 = vmatprep.subr.mxu0 0.0
    %160 = vmatpush1.msra.mxu0 0.0
    %161 = vmatprep.subr.mxu0 0.0
    %162 = vmatpush1.msra.mxu0 0.0
    %163 = vmatprep.subr.mxu0 0.0
    %164 = vmatpush1.msra.mxu0 0.0
    %165 = vmatprep.subr.mxu0 0.0
    %166 = vmatpush1.msra.mxu0 0.0
    %167 = vmatprep.subr.mxu0 0.0
    %168 = vmatpush1.msra.mxu0 0.0
    %169 = vmatprep.subr.mxu0 0.0
    %170 = vmatpush1.msra.mxu0 0.0
    %171 = vmatprep.subr.mxu0 0.0
    %172 = vmatpush1.msra.mxu0 0.0
    %173 = vmatprep.subr.mxu0 0.0
    %174 = vmatpush1.msra.mxu0 0.0
    %175 = vmatprep.subr.mxu0 0.0
    %176 = vmatpush1.msra.mxu0 0.0
    %177 = vmatprep.subr.mxu0 0.0
    %178 = vmatpush1.msra.mxu0 0.0
    %179 = vmatprep.subr.mxu0 0.0
    %180 = vmatpush1.msra.mxu0 0.0
    %181 = vmatprep.subr.mxu0 0.0
    %182 = vmatpush1.msra.mxu0 0.0
    %183 = vmatprep.subr.mxu0 0.0
    %184 = vmatpush1.msra.mxu0 0.0
    %185 = vmatprep.subr.mxu0 0.0
    %186 = vmatpush1.msra.mxu0 0.0
    %187 = vmatprep.subr.mxu0 0.0
    %188 = vmatpush1.msra.mxu0 0.0
    %189 = vmatprep.mubr.f32.mxu0 0.0
    %190 = vmatmul.mubr.f32.gmra.mrb[0].mxu0 %v78
    %v191 = vpop.f32.mrb[0].mxu0
    %v192 = vadd.f32 %v74, %v191
    %v193 = vpop.f32.mrb[0].mxu0
    %194 = vmatprep.mubr.f32.mxu0 0.0
    %195 = vmatmul.mubr.f32.gmra.mrb[0].mxu0 %v81
    %v196 = vpop.f32.mrb[0].mxu0
    %v197 = vadd.f32 %v74, %v196
    %v198 = vpop.f32.mrb[0].mxu0
    %199 = vmatprep.mubr.f32.mxu0 0.0
    %200 = vmatmul.mubr.f32.gmra.mrb[0].mxu0 %v84
    %v201 = vpop.f32.mrb[0].mxu0
    %v202 = vadd.f32 %v74, %v201
    %v203 = vpop.f32.mrb[0].mxu0
    %204 = vmatprep.mubr.f32.mxu0 0.0
    %205 = vmatmul.mubr.f32.gmra.mrb[0].mxu0 %v87
    %v206 = vpop.f32.mrb[0].mxu0
    %v207 = vadd.f32 %v74, %v206
    %v208 = vpop.f32.mrb[0].mxu0
    %209 = vmatprep.mubr.f32.mxu0 0.0
    %210 = vmatmul.mubr.f32.gmra.mrb[0].mxu0 %v90
    %v211 = vpop.f32.mrb[0].mxu0
    %v212 = vadd.f32 %v74, %v211
    %v213 = vpop.f32.mrb[0].mxu0
    %214 = vmatprep.mubr.f32.mxu0 0.0
    %215 = vmatmul.mubr.f32.gmra.mrb[0].mxu0 %v93
    %v216 = vpop.f32.mrb[0].mxu0
    %v217 = vadd.f32 %v74, %v216
    %v218 = vpop.f32.mrb[0].mxu0
    %219 = vmatprep.mubr.f32.mxu0 0.0
    %220 = vmatmul.mubr.f32.gmra.mrb[0].mxu0 %v96
    %v221 = vpop.f32.mrb[0].mxu0
    %v222 = vadd.f32 %v74, %v221
    %v223 = vpop.f32.mrb[0].mxu0
    %224 = vmatprep.mubr.f32.mxu0 0.0
    %225 = vmatmul.mubr.f32.gmra.mrb[0].mxu0 %v99
    %v226 = vpop.f32.mrb[0].mxu0
    %v227 = vadd.f32 %v74, %v226
    %v228 = vpop.f32.mrb[0].mxu0
    %229 = vmatprep.mubr.f32.mxu0 0.0
    %230 = vmatmul.mubr.f32.gmra.mrb[0].mxu0 %v102
    %v231 = vpop.f32.mrb[0].mxu0
    %v232 = vadd.f32 %v74, %v231
    %v233 = vpop.f32.mrb[0].mxu0
    %234 = vmatprep.mubr.f32.mxu0 0.0
    %235 = vmatmul.mubr.f32.gmra.mrb[0].mxu0 %v105
    %v236 = vpop.f32.mrb[0].mxu0
    %v237 = vadd.f32 %v74, %v236
    %v238 = vpop.f32.mrb[0].mxu0
    %239 = vmatprep.mubr.f32.mxu0 0.0
    %240 = vmatmul.mubr.f32.gmra.mrb[0].mxu0 %v108
    %v241 = vpop.f32.mrb[0].mxu0
    %v242 = vadd.f32 %v74, %v241
    %v243 = vpop.f32.mrb[0].mxu0
    %244 = vmatprep.mubr.f32.mxu0 0.0
    %245 = vmatmul.mubr.f32.gmra.mrb[0].mxu0 %v111
    %v246 = vpop.f32.mrb[0].mxu0
    %v247 = vadd.f32 %v74, %v246
    %v248 = vpop.f32.mrb[0].mxu0
    %249 = vmatprep.mubr.f32.mxu0 0.0
    %250 = vmatmul.mubr.f32.gmra.mrb[0].mxu0 %v114
    %v251 = vpop.f32.mrb[0].mxu0
    %v252 = vadd.f32 %v74, %v251
    %v253 = vpop.f32.mrb[0].mxu0
    %254 = vmatprep.mubr.f32.mxu0 0.0
    %255 = vmatmul.mubr.f32.gmra.mrb[0].mxu0 %v117
    %v256 = vpop.f32.mrb[0].mxu0
    %v257 = vadd.f32 %v74, %v256
    %v258 = vpop.f32.mrb[0].mxu0
    %259 = vmatprep.mubr.f32.mxu0 0.0
    %260 = vmatmul.mubr.f32.gmra.mrb[0].mxu0 %v120
    %v261 = vpop.f32.mrb[0].mxu0
    %v262 = vadd.f32 %v74, %v261
    %v263 = vpop.f32.mrb[0].mxu0
    %264 = vmatprep.mubr.f32.mxu0 0.0
    %265 = vmatmul.mubr.f32.gmra.mrb[0].mxu0 %v123
    %v266 = vpop.f32.mrb[0].mxu0
    %v267 = vadd.f32 %v74, %v266
    %v268 = vpop.f32.mrb[0].mxu0
    %269 = vdwg.mxu0
    %v270 = vtanh.pop %v192
    %v271 = vtanh.pop %v197
    %v272 = vtanh.pop %v202
    %v273 = vtanh.pop %v207
    %v274 = vtanh.pop %v212
    %v275 = vtanh.pop %v217
    %v276 = vtanh.pop %v222
    %v277 = vtanh.pop %v227
    %v278 = vtanh.pop %v232
    %v279 = vtanh.pop %v237
    %v280 = vtanh.pop %v242
    %v281 = vtanh.pop %v247
    %v282 = vtanh.pop %v252
    %v283 = vtanh.pop %v257
    %v284 = vtanh.pop %v262
    %v285 = vtanh.pop %v267
    %v286 = vld [vmem:[%s4] sm:$0x1]
    %v288 = vlaneseq
    %v289 = vshrl.u32 %v288, 7
    %v290 = vsub.s32 0, %v289
    %v291 = vrot.slane %v286, %v290
    %v293 = vmul.f32 %v270, %v291
    %v294 = vmul.f32 %v271, %v291
    %v295 = vmul.f32 %v272, %v291
    %v296 = vmul.f32 %v273, %v291
    %v297 = vmul.f32 %v274, %v291
    %v298 = vmul.f32 %v275, %v291
    %v299 = vmul.f32 %v276, %v291
    %v300 = vmul.f32 %v277, %v291
    %v301 = vmul.f32 %v278, %v291
    %v302 = vmul.f32 %v279, %v291
    %v303 = vmul.f32 %v280, %v291
    %v304 = vmul.f32 %v281, %v291
    %v305 = vmul.f32 %v282, %v291
    %v306 = vmul.f32 %v283, %v291
    %v307 = vmul.f32 %v284, %v291
    %v308 = vmul.f32 %v285, %v291
    %v309 = vsel %vm76, %v293, 0.0
    %310 = vadd.xlane.f32.xlu0 %v309
    %v311 = vpop.xlane.xlu0 %310
    %v312 = vsel %vm76, %v294, 0.0
    %313 = vadd.xlane.f32.xlu0 %v312
    %v314 = vpop.xlane.xlu0 %313
    %v315 = vsel %vm76, %v295, 0.0
    %316 = vadd.xlane.f32.xlu0 %v315
    %v317 = vpop.xlane.xlu0 %316
    %v318 = vsel %vm76, %v296, 0.0
    %319 = vadd.xlane.f32.xlu0 %v318
    %v320 = vpop.xlane.xlu0 %319
    %v321 = vsel %vm76, %v297, 0.0
    %322 = vadd.xlane.f32.xlu0 %v321
    %v323 = vpop.xlane.xlu0 %322
    %v324 = vsel %vm76, %v298, 0.0
    %325 = vadd.xlane.f32.xlu0 %v324
    %v326 = vpop.xlane.xlu0 %325
    %v327 = vsel %vm76, %v299, 0.0
    %328 = vadd.xlane.f32.xlu0 %v327
    %v329 = vpop.xlane.xlu0 %328
    %v330 = vsel %vm76, %v300, 0.0
    %331 = vadd.xlane.f32.xlu0 %v330
    %v332 = vpop.xlane.xlu0 %331
    %v333 = vsel %vm76, %v301, 0.0
    %334 = vadd.xlane.f32.xlu0 %v333
    %v335 = vpop.xlane.xlu0 %334
    %v336 = vsel %vm76, %v302, 0.0
    %337 = vadd.xlane.f32.xlu0 %v336
    %v338 = vpop.xlane.xlu0 %337
    %v339 = vsel %vm76, %v303, 0.0
    %340 = vadd.xlane.f32.xlu0 %v339
    %v341 = vpop.xlane.xlu0 %340
    %v342 = vsel %vm76, %v304, 0.0
    %343 = vadd.xlane.f32.xlu0 %v342
    %v344 = vpop.xlane.xlu0 %343
    %v345 = vsel %vm76, %v305, 0.0
    %346 = vadd.xlane.f32.xlu0 %v345
    %v347 = vpop.xlane.xlu0 %346
    %v348 = vsel %vm76, %v306, 0.0
    %349 = vadd.xlane.f32.xlu0 %v348
    %v350 = vpop.xlane.xlu0 %349
    %v351 = vsel %vm76, %v307, 0.0
    %352 = vadd.xlane.f32.xlu0 %v351
    %v353 = vpop.xlane.xlu0 %352
    %v354 = vsel %vm76, %v308, 0.0
    %355 = vadd.xlane.f32.xlu0 %v354
    %v356 = vpop.xlane.xlu0 %355
    %v357 = vld [vmem:[%s1] sm:$0xff]
    %v358 = vld [vmem:[%s1 + $0x8] sm:$0xff]
    %vm359 = vcmp.ne.f32.partialorder %v357, 0.0
    %vm360 = vcmp.ne.f32.partialorder %v358, 0.0
    %v377 = vlaneseq
    %v378 = vand.u32 %v377, 127
    %v379 = vlaneseq
    %v380 = vshrl.u32 %v379, 7
    %v381 = vsub.s32 %v378, %v380
    %v382 = vrot.slane %v311, %v381
    %v383 = vlaneseq
    %v384 = vshrl.u32 %v383, 7
    %v385 = vsub.s32 %v378, %v384
    %v386 = vrot.slane %v314, %v385
    %v387 = vlaneseq
    %v388 = vshrl.u32 %v387, 7
    %v389 = vsub.s32 %v378, %v388
    %v390 = vrot.slane %v317, %v389
    %v391 = vlaneseq
    %v392 = vshrl.u32 %v391, 7
    %v393 = vsub.s32 %v378, %v392
    %v394 = vrot.slane %v320, %v393
    %v395 = vlaneseq
    %v396 = vshrl.u32 %v395, 7
    %v397 = vsub.s32 %v378, %v396
    %v398 = vrot.slane %v323, %v397
    %v399 = vlaneseq
    %v400 = vshrl.u32 %v399, 7
    %v401 = vsub.s32 %v378, %v400
    %v402 = vrot.slane %v326, %v401
    %v403 = vlaneseq
    %v404 = vshrl.u32 %v403, 7
    %v405 = vsub.s32 %v378, %v404
    %v406 = vrot.slane %v329, %v405
    %v407 = vlaneseq
    %v408 = vshrl.u32 %v407, 7
    %v409 = vsub.s32 %v378, %v408
    %v410 = vrot.slane %v332, %v409
    %v411 = vlaneseq
    %v412 = vshrl.u32 %v411, 7
    %v413 = vsub.s32 %v378, %v412
    %v414 = vrot.slane %v335, %v413
    %v415 = vlaneseq
    %v416 = vshrl.u32 %v415, 7
    %v417 = vsub.s32 %v378, %v416
    %v418 = vrot.slane %v338, %v417
    %v419 = vlaneseq
    %v420 = vshrl.u32 %v419, 7
    %v421 = vsub.s32 %v378, %v420
    %v422 = vrot.slane %v341, %v421
    %v423 = vlaneseq
    %v424 = vshrl.u32 %v423, 7
    %v425 = vsub.s32 %v378, %v424
    %v426 = vrot.slane %v344, %v425
    %v427 = vlaneseq
    %v428 = vshrl.u32 %v427, 7
    %v429 = vsub.s32 %v378, %v428
    %v430 = vrot.slane %v347, %v429
    %v431 = vlaneseq
    %v432 = vshrl.u32 %v431, 7
    %v433 = vsub.s32 %v378, %v432
    %v434 = vrot.slane %v350, %v433
    %v435 = vlaneseq
    %v436 = vshrl.u32 %v435, 7
    %v437 = vsub.s32 %v378, %v436
    %v438 = vrot.slane %v353, %v437
    %v439 = vlaneseq
    %v440 = vshrl.u32 %v439, 7
    %v441 = vsub.s32 %v378, %v440
    %v442 = vrot.slane %v356, %v441
    %vm443 = vcmask 1041409
    %v444 = vsel %vm443, %v386, %v382
    %vm445 = vcmask 1042434
    %v446 = vsel %vm445, %v390, %v444
    %vm447 = vcmask 1043459
    %v448 = vsel %vm447, %v394, %v446
    %vm449 = vcmask 1044484
    %v450 = vsel %vm449, %v398, %v448
    %vm451 = vcmask 1045509
    %v452 = vsel %vm451, %v402, %v450
    %vm453 = vcmask 1046534
    %v454 = vsel %vm453, %v406, %v452
    %vm455 = vcmask 1047559
    %v456 = vsel %vm455, %v410, %v454
    %v457 = vsel %vm443, %v418, %v414
    %v458 = vsel %vm445, %v422, %v457
    %v459 = vsel %vm447, %v426, %v458
    %v460 = vsel %vm449, %v430, %v459
    %v461 = vsel %vm451, %v434, %v460
    %v462 = vsel %vm453, %v438, %v461
    %v463 = vsel %vm455, %v442, %v462
    %v466 = vsel %vm359, %v456, -2.1474836e+09
    %v467 = vsel %vm360, %v463, -2.1474836e+09
    %vm468 = vcmask 64512
    %v469 = vsel %vm468, %v466, -inf
    %470 = vmax.xlane.f32.xlu0 %v469
    %v471 = vpop.xlane.xlu0 %470
    %v472 = vsel %vm468, %v467, -inf
    %473 = vmax.xlane.f32.xlu0 %v472
    %v474 = vpop.xlane.xlu0 %473
    %v475 = vsub.f32 %v466, %v471
    %v476 = vsub.f32 %v467, %v474
    %v477 = vmul.f32 %v475, 1.442695
    %v478 = vpow.pop %v477
    %v479 = vmul.f32 %v476, 1.442695
    %v480 = vpow.pop %v479
    %v481 = vsel %vm468, %v478, 0.0
    %482 = vadd.xlane.f32.xlu0 %v481
    %v483 = vpop.xlane.xlu0 %482
    %v484 = vsel %vm468, %v480, 0.0
    %485 = vadd.xlane.f32.xlu0 %v484
    %v486 = vpop.xlane.xlu0 %485
    %v487 = vrcp.pop %v483
    %v488 = vrcp.pop %v486
    %v489 = vmul.f32 %v487, 0.17677669
    %v490 = vmul.f32 %v488, 0.17677669
    %v491 = vmul.f32 %v478, %v489
    %v492 = vmul.f32 %v480, %v490
    %v495 = vcombine.high %v491, %v491
    %v497 = vunpack.c.l.s4 1966171168
    %v498 = vunpack.c.0.s8 %v497
    %v499 = vlaneseq
    %v500 = vshrl.u32 %v499, 7
    %v501 = vsub.s32 %v498, %v500
    %v502 = vrot.slane %v491, %v501
    %v504 = vunpack.c.l.s4 1966171168
    %v505 = vunpack.c.0.s8 %v504
    %v506 = vlaneseq
    %v507 = vshrl.u32 %v506, 7
    %v508 = vsub.s32 %v505, %v507
    %v509 = vrot.slane %v495, %v508
    %v510 = vcombine.high %v502, %v502
    %v511 = vcombine.high %v509, %v509
    %v513 = vunpack.c.l.s4 1966171168
    %v514 = vunpack.c.0.s8 %v513
    %v515 = vlaneseq
    %v516 = vshrl.u32 %v515, 7
    %v517 = vsub.s32 %v514, %v516
    %v518 = vrot.slane %v502, %v517
    %v520 = vunpack.c.l.s4 1966171168
    %v521 = vunpack.c.0.s8 %v520
    %v522 = vlaneseq
    %v523 = vshrl.u32 %v522, 7
    %v524 = vsub.s32 %v521, %v523
    %v525 = vrot.slane %v509, %v524
    %v527 = vunpack.c.l.s4 1966171168
    %v528 = vunpack.c.0.s8 %v527
    %v529 = vlaneseq
    %v530 = vshrl.u32 %v529, 7
    %v531 = vsub.s32 %v528, %v530
    %v532 = vrot.slane %v510, %v531
    %v534 = vunpack.c.l.s4 1966171168
    %v535 = vunpack.c.0.s8 %v534
    %v536 = vlaneseq
    %v537 = vshrl.u32 %v536, 7
    %v538 = vsub.s32 %v535, %v537
    %v539 = vrot.slane %v511, %v538
    %v540 = vcombine.high %v518, %v518
    %v541 = vcombine.high %v525, %v525
    %v542 = vcombine.high %v532, %v532
    %v543 = vcombine.high %v539, %v539
    %v544 = vcombine.high %v492, %v492
    %v546 = vunpack.c.l.s4 1966171168
    %v547 = vunpack.c.0.s8 %v546
    %v548 = vlaneseq
    %v549 = vshrl.u32 %v548, 7
    %v550 = vsub.s32 %v547, %v549
    %v551 = vrot.slane %v492, %v550
    %v553 = vunpack.c.l.s4 1966171168
    %v554 = vunpack.c.0.s8 %v553
    %v555 = vlaneseq
    %v556 = vshrl.u32 %v555, 7
    %v557 = vsub.s32 %v554, %v556
    %v558 = vrot.slane %v544, %v557
    %v559 = vcombine.high %v551, %v551
    %v560 = vcombine.high %v558, %v558
    %v562 = vunpack.c.l.s4 1966171168
    %v563 = vunpack.c.0.s8 %v562
    %v564 = vlaneseq
    %v565 = vshrl.u32 %v564, 7
    %v566 = vsub.s32 %v563, %v565
    %v567 = vrot.slane %v551, %v566
    %v569 = vunpack.c.l.s4 1966171168
    %v570 = vunpack.c.0.s8 %v569
    %v571 = vlaneseq
    %v572 = vshrl.u32 %v571, 7
    %v573 = vsub.s32 %v570, %v572
    %v574 = vrot.slane %v558, %v573
    %v576 = vunpack.c.l.s4 1966171168
    %v577 = vunpack.c.0.s8 %v576
    %v578 = vlaneseq
    %v579 = vshrl.u32 %v578, 7
    %v580 = vsub.s32 %v577, %v579
    %v581 = vrot.slane %v559, %v580
    %v583 = vunpack.c.l.s4 1966171168
    %v584 = vunpack.c.0.s8 %v583
    %v585 = vlaneseq
    %v586 = vshrl.u32 %v585, 7
    %v587 = vsub.s32 %v584, %v586
    %v588 = vrot.slane %v560, %v587
    %v589 = vcombine.high %v567, %v567
    %v590 = vcombine.high %v574, %v574
    %v591 = vcombine.high %v581, %v581
    %v592 = vcombine.high %v588, %v588
    %v593 = vsel %vm468, %v518, 0
    %595 = vmatprep.subr.mxu0 0.0
    %596 = vmatpush1.msra.mxu0 %v49
    %597 = vmatprep.subr.mxu0 0.0
    %598 = vmatpush1.msra.mxu0 0.0
    %599 = vmatprep.subr.mxu0 0.0
    %600 = vmatpush1.msra.mxu0 0.0
    %601 = vmatprep.subr.mxu0 0.0
    %602 = vmatpush1.msra.mxu0 0.0
    %603 = vmatprep.subr.mxu0 0.0
    %604 = vmatpush1.msra.mxu0 0.0
    %605 = vmatprep.subr.mxu0 0.0
    %606 = vmatpush1.msra.mxu0 0.0
    %607 = vmatprep.subr.mxu0 0.0
    %608 = vmatpush1.msra.mxu0 0.0
    %609 = vmatprep.subr.mxu0 0.0
    %610 = vmatpush1.msra.mxu0 0.0
    %611 = vmatprep.subr.mxu0 0.0
    %612 = vmatpush1.msra.mxu0 0.0
    %613 = vmatprep.subr.mxu0 0.0
    %614 = vmatpush1.msra.mxu0 0.0
    %615 = vmatprep.subr.mxu0 0.0
    %616 = vmatpush1.msra.mxu0 0.0
    %617 = vmatprep.subr.mxu0 0.0
    %618 = vmatpush1.msra.mxu0 0.0
    %619 = vmatprep.subr.mxu0 0.0
    %620 = vmatpush1.msra.mxu0 0.0
    %621 = vmatprep.subr.mxu0 0.0
    %622 = vmatpush1.msra.mxu0 0.0
    %623 = vmatprep.subr.mxu0 0.0
    %624 = vmatpush1.msra.mxu0 0.0
    %625 = vmatprep.subr.mxu0 0.0
    %626 = vmatpush1.msra.mxu0 0.0
    %627 = vmatprep.subr.mxu0 0.0
    %628 = vmatpush1.msra.mxu0 0.0
    %629 = vmatprep.subr.mxu0 0.0
    %630 = vmatpush1.msra.mxu0 0.0
    %631 = vmatprep.subr.mxu0 0.0
    %632 = vmatpush1.msra.mxu0 0.0
    %633 = vmatprep.subr.mxu0 0.0
    %634 = vmatpush1.msra.mxu0 0.0
    %635 = vmatprep.subr.mxu0 0.0
    %636 = vmatpush1.msra.mxu0 0.0
    %637 = vmatprep.subr.mxu0 0.0
    %638 = vmatpush1.msra.mxu0 0.0
    %639 = vmatprep.subr.mxu0 0.0
    %640 = vmatpush1.msra.mxu0 0.0
    %641 = vmatprep.subr.mxu0 0.0
    %642 = vmatpush1.msra.mxu0 0.0
    %643 = vmatprep.subr.mxu0 0.0
    %644 = vmatpush1.msra.mxu0 0.0
    %645 = vmatprep.subr.mxu0 0.0
    %646 = vmatpush1.msra.mxu0 0.0
    %647 = vmatprep.subr.mxu0 0.0
    %648 = vmatpush1.msra.mxu0 0.0
    %649 = vmatprep.subr.mxu0 0.0
    %650 = vmatpush1.msra.mxu0 0.0
    %651 = vmatprep.subr.mxu0 0.0
    %652 = vmatpush1.msra.mxu0 0.0
    %653 = vmatprep.subr.mxu0 0.0
    %654 = vmatpush1.msra.mxu0 0.0
    %655 = vmatprep.subr.mxu0 0.0
    %656 = vmatpush1.msra.mxu0 0.0
    %657 = vmatprep.subr.mxu0 0.0
    %658 = vmatpush1.msra.mxu0 0.0
    %659 = vmatprep.mubr.f32.mxu0 0.0
    %660 = vmatmul.mubr.f32.gmra.mrb[0].mxu0 %v593
    %v661 = vpop.f32.mrb[0].mxu0
    %v662 = vadd.f32 0.0, %v661
    %v663 = vpop.f32.mrb[0].mxu0
    %664 = vdwg.mxu0
    %v665 = vsel %vm468, %v532, 0
    %667 = vmatprep.subr.mxu0 0.0
    %668 = vmatpush1.msra.mxu0 %v50
    %669 = vmatprep.subr.mxu0 0.0
    %670 = vmatpush1.msra.mxu0 0.0
    %671 = vmatprep.subr.mxu0 0.0
    %672 = vmatpush1.msra.mxu0 0.0
    %673 = vmatprep.subr.mxu0 0.0
    %674 = vmatpush1.msra.mxu0 0.0
    %675 = vmatprep.subr.mxu0 0.0
    %676 = vmatpush1.msra.mxu0 0.0
    %677 = vmatprep.subr.mxu0 0.0
    %678 = vmatpush1.msra.mxu0 0.0
    %679 = vmatprep.subr.mxu0 0.0
    %680 = vmatpush1.msra.mxu0 0.0
    %681 = vmatprep.subr.mxu0 0.0
    %682 = vmatpush1.msra.mxu0 0.0
    %683 = vmatprep.subr.mxu0 0.0
    %684 = vmatpush1.msra.mxu0 0.0
    %685 = vmatprep.subr.mxu0 0.0
    %686 = vmatpush1.msra.mxu0 0.0
    %687 = vmatprep.subr.mxu0 0.0
    %688 = vmatpush1.msra.mxu0 0.0
    %689 = vmatprep.subr.mxu0 0.0
    %690 = vmatpush1.msra.mxu0 0.0
    %691 = vmatprep.subr.mxu0 0.0
    %692 = vmatpush1.msra.mxu0 0.0
    %693 = vmatprep.subr.mxu0 0.0
    %694 = vmatpush1.msra.mxu0 0.0
    %695 = vmatprep.subr.mxu0 0.0
    %696 = vmatpush1.msra.mxu0 0.0
    %697 = vmatprep.subr.mxu0 0.0
    %698 = vmatpush1.msra.mxu0 0.0
    %699 = vmatprep.subr.mxu0 0.0
    %700 = vmatpush1.msra.mxu0 0.0
    %701 = vmatprep.subr.mxu0 0.0
    %702 = vmatpush1.msra.mxu0 0.0
    %703 = vmatprep.subr.mxu0 0.0
    %704 = vmatpush1.msra.mxu0 0.0
    %705 = vmatprep.subr.mxu0 0.0
    %706 = vmatpush1.msra.mxu0 0.0
    %707 = vmatprep.subr.mxu0 0.0
    %708 = vmatpush1.msra.mxu0 0.0
    %709 = vmatprep.subr.mxu0 0.0
    %710 = vmatpush1.msra.mxu0 0.0
    %711 = vmatprep.subr.mxu0 0.0
    %712 = vmatpush1.msra.mxu0 0.0
    %713 = vmatprep.subr.mxu0 0.0
    %714 = vmatpush1.msra.mxu0 0.0
    %715 = vmatprep.subr.mxu0 0.0
    %716 = vmatpush1.msra.mxu0 0.0
    %717 = vmatprep.subr.mxu0 0.0
    %718 = vmatpush1.msra.mxu0 0.0
    %719 = vmatprep.subr.mxu0 0.0
    %720 = vmatpush1.msra.mxu0 0.0
    %721 = vmatprep.subr.mxu0 0.0
    %722 = vmatpush1.msra.mxu0 0.0
    %723 = vmatprep.subr.mxu0 0.0
    %724 = vmatpush1.msra.mxu0 0.0
    %725 = vmatprep.subr.mxu0 0.0
    %726 = vmatpush1.msra.mxu0 0.0
    %727 = vmatprep.subr.mxu0 0.0
    %728 = vmatpush1.msra.mxu0 0.0
    %729 = vmatprep.subr.mxu0 0.0
    %730 = vmatpush1.msra.mxu0 0.0
    %731 = vmatprep.mubr.f32.mxu0 0.0
    %732 = vmatmul.mubr.f32.gmra.mrb[0].mxu0 %v665
    %v733 = vpop.f32.mrb[0].mxu0
    %v734 = vadd.f32 0.0, %v733
    %v735 = vpop.f32.mrb[0].mxu0
    %736 = vdwg.mxu0
    %v737 = vsel %vm468, %v540, 0
    %739 = vmatprep.subr.mxu0 0.0
    %740 = vmatpush1.msra.mxu0 %v51
    %741 = vmatprep.subr.mxu0 0.0
    %742 = vmatpush1.msra.mxu0 0.0
    %743 = vmatprep.subr.mxu0 0.0
    %744 = vmatpush1.msra.mxu0 0.0
    %745 = vmatprep.subr.mxu0 0.0
    %746 = vmatpush1.msra.mxu0 0.0
    %747 = vmatprep.subr.mxu0 0.0
    %748 = vmatpush1.msra.mxu0 0.0
    %749 = vmatprep.subr.mxu0 0.0
    %750 = vmatpush1.msra.mxu0 0.0
    %751 = vmatprep.subr.mxu0 0.0
    %752 = vmatpush1.msra.mxu0 0.0
    %753 = vmatprep.subr.mxu0 0.0
    %754 = vmatpush1.msra.mxu0 0.0
    %755 = vmatprep.subr.mxu0 0.0
    %756 = vmatpush1.msra.mxu0 0.0
    %757 = vmatprep.subr.mxu0 0.0
    %758 = vmatpush1.msra.mxu0 0.0
    %759 = vmatprep.subr.mxu0 0.0
    %760 = vmatpush1.msra.mxu0 0.0
    %761 = vmatprep.subr.mxu0 0.0
    %762 = vmatpush1.msra.mxu0 0.0
    %763 = vmatprep.subr.mxu0 0.0
    %764 = vmatpush1.msra.mxu0 0.0
    %765 = vmatprep.subr.mxu0 0.0
    %766 = vmatpush1.msra.mxu0 0.0
    %767 = vmatprep.subr.mxu0 0.0
    %768 = vmatpush1.msra.mxu0 0.0
    %769 = vmatprep.subr.mxu0 0.0
    %770 = vmatpush1.msra.mxu0 0.0
    %771 = vmatprep.subr.mxu0 0.0
    %772 = vmatpush1.msra.mxu0 0.0
    %773 = vmatprep.subr.mxu0 0.0
    %774 = vmatpush1.msra.mxu0 0.0
    %775 = vmatprep.subr.mxu0 0.0
    %776 = vmatpush1.msra.mxu0 0.0
    %777 = vmatprep.subr.mxu0 0.0
    %778 = vmatpush1.msra.mxu0 0.0
    %779 = vmatprep.subr.mxu0 0.0
    %780 = vmatpush1.msra.mxu0 0.0
    %781 = vmatprep.subr.mxu0 0.0
    %782 = vmatpush1.msra.mxu0 0.0
    %783 = vmatprep.subr.mxu0 0.0
    %784 = vmatpush1.msra.mxu0 0.0
    %785 = vmatprep.subr.mxu0 0.0
    %786 = vmatpush1.msra.mxu0 0.0
    %787 = vmatprep.subr.mxu0 0.0
    %788 = vmatpush1.msra.mxu0 0.0
    %789 = vmatprep.subr.mxu0 0.0
    %790 = vmatpush1.msra.mxu0 0.0
    %791 = vmatprep.subr.mxu0 0.0
    %792 = vmatpush1.msra.mxu0 0.0
    %793 = vmatprep.subr.mxu0 0.0
    %794 = vmatpush1.msra.mxu0 0.0
    %795 = vmatprep.subr.mxu0 0.0
    %796 = vmatpush1.msra.mxu0 0.0
    %797 = vmatprep.subr.mxu0 0.0
    %798 = vmatpush1.msra.mxu0 0.0
    %799 = vmatprep.subr.mxu0 0.0
    %800 = vmatpush1.msra.mxu0 0.0
    %801 = vmatprep.subr.mxu0 0.0
    %802 = vmatpush1.msra.mxu0 0.0
    %803 = vmatprep.mubr.f32.mxu0 0.0
    %804 = vmatmul.mubr.f32.gmra.mrb[0].mxu0 %v737
    %v805 = vpop.f32.mrb[0].mxu0
    %v806 = vadd.f32 0.0, %v805
    %v807 = vpop.f32.mrb[0].mxu0
    %808 = vdwg.mxu0
    %v809 = vsel %vm468, %v542, 0
    %811 = vmatprep.subr.mxu0 0.0
    %812 = vmatpush1.msra.mxu0 %v52
    %813 = vmatprep.subr.mxu0 0.0
    %814 = vmatpush1.msra.mxu0 0.0
    %815 = vmatprep.subr.mxu0 0.0
    %816 = vmatpush1.msra.mxu0 0.0
    %817 = vmatprep.subr.mxu0 0.0
    %818 = vmatpush1.msra.mxu0 0.0
    %819 = vmatprep.subr.mxu0 0.0
    %820 = vmatpush1.msra.mxu0 0.0
    %821 = vmatprep.subr.mxu0 0.0
    %822 = vmatpush1.msra.mxu0 0.0
    %823 = vmatprep.subr.mxu0 0.0
    %824 = vmatpush1.msra.mxu0 0.0
    %825 = vmatprep.subr.mxu0 0.0
    %826 = vmatpush1.msra.mxu0 0.0
    %827 = vmatprep.subr.mxu0 0.0
    %828 = vmatpush1.msra.mxu0 0.0
    %829 = vmatprep.subr.mxu0 0.0
    %830 = vmatpush1.msra.mxu0 0.0
    %831 = vmatprep.subr.mxu0 0.0
    %832 = vmatpush1.msra.mxu0 0.0
    %833 = vmatprep.subr.mxu0 0.0
    %834 = vmatpush1.msra.mxu0 0.0
    %835 = vmatprep.subr.mxu0 0.0
    %836 = vmatpush1.msra.mxu0 0.0
    %837 = vmatprep.subr.mxu0 0.0
    %838 = vmatpush1.msra.mxu0 0.0
    %839 = vmatprep.subr.mxu0 0.0
    %840 = vmatpush1.msra.mxu0 0.0
    %841 = vmatprep.subr.mxu0 0.0
    %842 = vmatpush1.msra.mxu0 0.0
    %843 = vmatprep.subr.mxu0 0.0
    %844 = vmatpush1.msra.mxu0 0.0
    %845 = vmatprep.subr.mxu0 0.0
    %846 = vmatpush1.msra.mxu0 0.0
    %847 = vmatprep.subr.mxu0 0.0
    %848 = vmatpush1.msra.mxu0 0.0
    %849 = vmatprep.subr.mxu0 0.0
    %850 = vmatpush1.msra.mxu0 0.0
    %851 = vmatprep.subr.mxu0 0.0
    %852 = vmatpush1.msra.mxu0 0.0
    %853 = vmatprep.subr.mxu0 0.0
    %854 = vmatpush1.msra.mxu0 0.0
    %855 = vmatprep.subr.mxu0 0.0
    %856 = vmatpush1.msra.mxu0 0.0
    %857 = vmatprep.subr.mxu0 0.0
    %858 = vmatpush1.msra.mxu0 0.0
    %859 = vmatprep.subr.mxu0 0.0
    %860 = vmatpush1.msra.mxu0 0.0
    %861 = vmatprep.subr.mxu0 0.0
    %862 = vmatpush1.msra.mxu0 0.0
    %863 = vmatprep.subr.mxu0 0.0
    %864 = vmatpush1.msra.mxu0 0.0
    %865 = vmatprep.subr.mxu0 0.0
    %866 = vmatpush1.msra.mxu0 0.0
    %867 = vmatprep.subr.mxu0 0.0
    %868 = vmatpush1.msra.mxu0 0.0
    %869 = vmatprep.subr.mxu0 0.0
    %870 = vmatpush1.msra.mxu0 0.0
    %871 = vmatprep.subr.mxu0 0.0
    %872 = vmatpush1.msra.mxu0 0.0
    %873 = vmatprep.subr.mxu0 0.0
    %874 = vmatpush1.msra.mxu0 0.0
    %875 = vmatprep.mubr.f32.mxu0 0.0
    %876 = vmatmul.mubr.f32.gmra.mrb[0].mxu0 %v809
    %v877 = vpop.f32.mrb[0].mxu0
    %v878 = vadd.f32 0.0, %v877
    %v879 = vpop.f32.mrb[0].mxu0
    %880 = vdwg.mxu0
    %v881 = vsel %vm468, %v525, 0
    %883 = vmatprep.subr.mxu0 0.0
    %884 = vmatpush1.msra.mxu0 %v53
    %885 = vmatprep.subr.mxu0 0.0
    %886 = vmatpush1.msra.mxu0 0.0
    %887 = vmatprep.subr.mxu0 0.0
    %888 = vmatpush1.msra.mxu0 0.0
    %889 = vmatprep.subr.mxu0 0.0
    %890 = vmatpush1.msra.mxu0 0.0
    %891 = vmatprep.subr.mxu0 0.0
    %892 = vmatpush1.msra.mxu0 0.0
    %893 = vmatprep.subr.mxu0 0.0
    %894 = vmatpush1.msra.mxu0 0.0
    %895 = vmatprep.subr.mxu0 0.0
    %896 = vmatpush1.msra.mxu0 0.0
    %897 = vmatprep.subr.mxu0 0.0
    %898 = vmatpush1.msra.mxu0 0.0
    %899 = vmatprep.subr.mxu0 0.0
    %900 = vmatpush1.msra.mxu0 0.0
    %901 = vmatprep.subr.mxu0 0.0
    %902 = vmatpush1.msra.mxu0 0.0
    %903 = vmatprep.subr.mxu0 0.0
    %904 = vmatpush1.msra.mxu0 0.0
    %905 = vmatprep.subr.mxu0 0.0
    %906 = vmatpush1.msra.mxu0 0.0
    %907 = vmatprep.subr.mxu0 0.0
    %908 = vmatpush1.msra.mxu0 0.0
    %909 = vmatprep.subr.mxu0 0.0
    %910 = vmatpush1.msra.mxu0 0.0
    %911 = vmatprep.subr.mxu0 0.0
    %912 = vmatpush1.msra.mxu0 0.0
    %913 = vmatprep.subr.mxu0 0.0
    %914 = vmatpush1.msra.mxu0 0.0
    %915 = vmatprep.subr.mxu0 0.0
    %916 = vmatpush1.msra.mxu0 0.0
    %917 = vmatprep.subr.mxu0 0.0
    %918 = vmatpush1.msra.mxu0 0.0
    %919 = vmatprep.subr.mxu0 0.0
    %920 = vmatpush1.msra.mxu0 0.0
    %921 = vmatprep.subr.mxu0 0.0
    %922 = vmatpush1.msra.mxu0 0.0
    %923 = vmatprep.subr.mxu0 0.0
    %924 = vmatpush1.msra.mxu0 0.0
    %925 = vmatprep.subr.mxu0 0.0
    %926 = vmatpush1.msra.mxu0 0.0
    %927 = vmatprep.subr.mxu0 0.0
    %928 = vmatpush1.msra.mxu0 0.0
    %929 = vmatprep.subr.mxu0 0.0
    %930 = vmatpush1.msra.mxu0 0.0
    %931 = vmatprep.subr.mxu0 0.0
    %932 = vmatpush1.msra.mxu0 0.0
    %933 = vmatprep.subr.mxu0 0.0
    %934 = vmatpush1.msra.mxu0 0.0
    %935 = vmatprep.subr.mxu0 0.0
    %936 = vmatpush1.msra.mxu0 0.0
    %937 = vmatprep.subr.mxu0 0.0
    %938 = vmatpush1.msra.mxu0 0.0
    %939 = vmatprep.subr.mxu0 0.0
    %940 = vmatpush1.msra.mxu0 0.0
    %941 = vmatprep.subr.mxu0 0.0
    %942 = vmatpush1.msra.mxu0 0.0
    %943 = vmatprep.subr.mxu0 0.0
    %944 = vmatpush1.msra.mxu0 0.0
    %945 = vmatprep.subr.mxu0 0.0
    %946 = vmatpush1.msra.mxu0 0.0
    %947 = vmatprep.mubr.f32.mxu0 0.0
    %948 = vmatmul.mubr.f32.gmra.mrb[0].mxu0 %v881
    %v949 = vpop.f32.mrb[0].mxu0
    %v950 = vadd.f32 0.0, %v949
    %v951 = vpop.f32.mrb[0].mxu0
    %952 = vdwg.mxu0
    %v953 = vsel %vm468, %v539, 0
    %955 = vmatprep.subr.mxu0 0.0
    %956 = vmatpush1.msra.mxu0 %v54
    %957 = vmatprep.subr.mxu0 0.0
    %958 = vmatpush1.msra.mxu0 0.0
    %959 = vmatprep.subr.mxu0 0.0
    %960 = vmatpush1.msra.mxu0 0.0
    %961 = vmatprep.subr.mxu0 0.0
    %962 = vmatpush1.msra.mxu0 0.0
    %963 = vmatprep.subr.mxu0 0.0
    %964 = vmatpush1.msra.mxu0 0.0
    %965 = vmatprep.subr.mxu0 0.0
    %966 = vmatpush1.msra.mxu0 0.0
    %967 = vmatprep.subr.mxu0 0.0
    %968 = vmatpush1.msra.mxu0 0.0
    %969 = vmatprep.subr.mxu0 0.0
    %970 = vmatpush1.msra.mxu0 0.0
    %971 = vmatprep.subr.mxu0 0.0
    %972 = vmatpush1.msra.mxu0 0.0
    %973 = vmatprep.subr.mxu0 0.0
    %974 = vmatpush1.msra.mxu0 0.0
    %975 = vmatprep.subr.mxu0 0.0
    %976 = vmatpush1.msra.mxu0 0.0
    %977 = vmatprep.subr.mxu0 0.0
    %978 = vmatpush1.msra.mxu0 0.0
    %979 = vmatprep.subr.mxu0 0.0
    %980 = vmatpush1.msra.mxu0 0.0
    %981 = vmatprep.subr.mxu0 0.0
    %982 = vmatpush1.msra.mxu0 0.0
    %983 = vmatprep.subr.mxu0 0.0
    %984 = vmatpush1.msra.mxu0 0.0
    %985 = vmatprep.subr.mxu0 0.0
    %986 = vmatpush1.msra.mxu0 0.0
    %987 = vmatprep.subr.mxu0 0.0
    %988 = vmatpush1.msra.mxu0 0.0
    %989 = vmatprep.subr.mxu0 0.0
    %990 = vmatpush1.msra.mxu0 0.0
    %991 = vmatprep.subr.mxu0 0.0
    %992 = vmatpush1.msra.mxu0 0.0
    %993 = vmatprep.subr.mxu0 0.0
    %994 = vmatpush1.msra.mxu0 0.0
    %995 = vmatprep.subr.mxu0 0.0
    %996 = vmatpush1.msra.mxu0 0.0
    %997 = vmatprep.subr.mxu0 0.0
    %998 = vmatpush1.msra.mxu0 0.0
    %999 = vmatprep.subr.mxu0 0.0
    %1000 = vmatpush1.msra.mxu0 0.0
    %1001 = vmatprep.subr.mxu0 0.0
    %1002 = vmatpush1.msra.mxu0 0.0
    %1003 = vmatprep.subr.mxu0 0.0
    %1004 = vmatpush1.msra.mxu0 0.0
    %1005 = vmatprep.subr.mxu0 0.0
    %1006 = vmatpush1.msra.mxu0 0.0
    %1007 = vmatprep.subr.mxu0 0.0
    %1008 = vmatpush1.msra.mxu0 0.0
    %1009 = vmatprep.subr.mxu0 0.0
    %1010 = vmatpush1.msra.mxu0 0.0
    %1011 = vmatprep.subr.mxu0 0.0
    %1012 = vmatpush1.msra.mxu0 0.0
    %1013 = vmatprep.subr.mxu0 0.0
    %1014 = vmatpush1.msra.mxu0 0.0
    %1015 = vmatprep.subr.mxu0 0.0
    %1016 = vmatpush1.msra.mxu0 0.0
    %1017 = vmatprep.subr.mxu0 0.0
    %1018 = vmatpush1.msra.mxu0 0.0
    %1019 = vmatprep.mubr.f32.mxu0 0.0
    %1020 = vmatmul.mubr.f32.gmra.mrb[0].mxu0 %v953
    %v1021 = vpop.f32.mrb[0].mxu0
    %v1022 = vadd.f32 0.0, %v1021
    %v1023 = vpop.f32.mrb[0].mxu0
    %1024 = vdwg.mxu0
    %v1025 = vsel %vm468, %v541, 0
    %1027 = vmatprep.subr.mxu0 0.0
    %1028 = vmatpush1.msra.mxu0 %v55
    %1029 = vmatprep.subr.mxu0 0.0
    %1030 = vmatpush1.msra.mxu0 0.0
    %1031 = vmatprep.subr.mxu0 0.0
    %1032 = vmatpush1.msra.mxu0 0.0
    %1033 = vmatprep.subr.mxu0 0.0
    %1034 = vmatpush1.msra.mxu0 0.0
    %1035 = vmatprep.subr.mxu0 0.0
    %1036 = vmatpush1.msra.mxu0 0.0
    %1037 = vmatprep.subr.mxu0 0.0
    %1038 = vmatpush1.msra.mxu0 0.0
    %1039 = vmatprep.subr.mxu0 0.0
    %1040 = vmatpush1.msra.mxu0 0.0
    %1041 = vmatprep.subr.mxu0 0.0
    %1042 = vmatpush1.msra.mxu0 0.0
    %1043 = vmatprep.subr.mxu0 0.0
    %1044 = vmatpush1.msra.mxu0 0.0
    %1045 = vmatprep.subr.mxu0 0.0
    %1046 = vmatpush1.msra.mxu0 0.0
    %1047 = vmatprep.subr.mxu0 0.0
    %1048 = vmatpush1.msra.mxu0 0.0
    %1049 = vmatprep.subr.mxu0 0.0
    %1050 = vmatpush1.msra.mxu0 0.0
    %1051 = vmatprep.subr.mxu0 0.0
    %1052 = vmatpush1.msra.mxu0 0.0
    %1053 = vmatprep.subr.mxu0 0.0
    %1054 = vmatpush1.msra.mxu0 0.0
    %1055 = vmatprep.subr.mxu0 0.0
    %1056 = vmatpush1.msra.mxu0 0.0
    %1057 = vmatprep.subr.mxu0 0.0
    %1058 = vmatpush1.msra.mxu0 0.0
    %1059 = vmatprep.subr.mxu0 0.0
    %1060 = vmatpush1.msra.mxu0 0.0
    %1061 = vmatprep.subr.mxu0 0.0
    %1062 = vmatpush1.msra.mxu0 0.0
    %1063 = vmatprep.subr.mxu0 0.0
    %1064 = vmatpush1.msra.mxu0 0.0
    %1065 = vmatprep.subr.mxu0 0.0
    %1066 = vmatpush1.msra.mxu0 0.0
    %1067 = vmatprep.subr.mxu0 0.0
    %1068 = vmatpush1.msra.mxu0 0.0
    %1069 = vmatprep.subr.mxu0 0.0
    %1070 = vmatpush1.msra.mxu0 0.0
    %1071 = vmatprep.subr.mxu0 0.0
    %1072 = vmatpush1.msra.mxu0 0.0
    %1073 = vmatprep.subr.mxu0 0.0
    %1074 = vmatpush1.msra.mxu0 0.0
    %1075 = vmatprep.subr.mxu0 0.0
    %1076 = vmatpush1.msra.mxu0 0.0
    %1077 = vmatprep.subr.mxu0 0.0
    %1078 = vmatpush1.msra.mxu0 0.0
    %1079 = vmatprep.subr.mxu0 0.0
    %1080 = vmatpush1.msra.mxu0 0.0
    %1081 = vmatprep.subr.mxu0 0.0
    %1082 = vmatpush1.msra.mxu0 0.0
    %1083 = vmatprep.subr.mxu0 0.0
    %1084 = vmatpush1.msra.mxu0 0.0
    %1085 = vmatprep.subr.mxu0 0.0
    %1086 = vmatpush1.msra.mxu0 0.0
    %1087 = vmatprep.subr.mxu0 0.0
    %1088 = vmatpush1.msra.mxu0 0.0
    %1089 = vmatprep.subr.mxu0 0.0
    %1090 = vmatpush1.msra.mxu0 0.0
    %1091 = vmatprep.mubr.f32.mxu0 0.0
    %1092 = vmatmul.mubr.f32.gmra.mrb[0].mxu0 %v1025
    %v1093 = vpop.f32.mrb[0].mxu0
    %v1094 = vadd.f32 0.0, %v1093
    %v1095 = vpop.f32.mrb[0].mxu0
    %1096 = vdwg.mxu0
    %v1097 = vsel %vm468, %v543, 0
    %1099 = vmatprep.subr.mxu0 0.0
    %1100 = vmatpush1.msra.mxu0 %v56
    %1101 = vmatprep.subr.mxu0 0.0
    %1102 = vmatpush1.msra.mxu0 0.0
    %1103 = vmatprep.subr.mxu0 0.0
    %1104 = vmatpush1.msra.mxu0 0.0
    %1105 = vmatprep.subr.mxu0 0.0
    %1106 = vmatpush1.msra.mxu0 0.0
    %1107 = vmatprep.subr.mxu0 0.0
    %1108 = vmatpush1.msra.mxu0 0.0
    %1109 = vmatprep.subr.mxu0 0.0
    %1110 = vmatpush1.msra.mxu0 0.0
    %1111 = vmatprep.subr.mxu0 0.0
    %1112 = vmatpush1.msra.mxu0 0.0
    %1113 = vmatprep.subr.mxu0 0.0
    %1114 = vmatpush1.msra.mxu0 0.0
    %1115 = vmatprep.subr.mxu0 0.0
    %1116 = vmatpush1.msra.mxu0 0.0
    %1117 = vmatprep.subr.mxu0 0.0
    %1118 = vmatpush1.msra.mxu0 0.0
    %1119 = vmatprep.subr.mxu0 0.0
    %1120 = vmatpush1.msra.mxu0 0.0
    %1121 = vmatprep.subr.mxu0 0.0
    %1122 = vmatpush1.msra.mxu0 0.0
    %1123 = vmatprep.subr.mxu0 0.0
    %1124 = vmatpush1.msra.mxu0 0.0
    %1125 = vmatprep.subr.mxu0 0.0
    %1126 = vmatpush1.msra.mxu0 0.0
    %1127 = vmatprep.subr.mxu0 0.0
    %1128 = vmatpush1.msra.mxu0 0.0
    %1129 = vmatprep.subr.mxu0 0.0
    %1130 = vmatpush1.msra.mxu0 0.0
    %1131 = vmatprep.subr.mxu0 0.0
    %1132 = vmatpush1.msra.mxu0 0.0
    %1133 = vmatprep.subr.mxu0 0.0
    %1134 = vmatpush1.msra.mxu0 0.0
    %1135 = vmatprep.subr.mxu0 0.0
    %1136 = vmatpush1.msra.mxu0 0.0
    %1137 = vmatprep.subr.mxu0 0.0
    %1138 = vmatpush1.msra.mxu0 0.0
    %1139 = vmatprep.subr.mxu0 0.0
    %1140 = vmatpush1.msra.mxu0 0.0
    %1141 = vmatprep.subr.mxu0 0.0
    %1142 = vmatpush1.msra.mxu0 0.0
    %1143 = vmatprep.subr.mxu0 0.0
    %1144 = vmatpush1.msra.mxu0 0.0
    %1145 = vmatprep.subr.mxu0 0.0
    %1146 = vmatpush1.msra.mxu0 0.0
    %1147 = vmatprep.subr.mxu0 0.0
    %1148 = vmatpush1.msra.mxu0 0.0
    %1149 = vmatprep.subr.mxu0 0.0
    %1150 = vmatpush1.msra.mxu0 0.0
    %1151 = vmatprep.subr.mxu0 0.0
    %1152 = vmatpush1.msra.mxu0 0.0
    %1153 = vmatprep.subr.mxu0 0.0
    %1154 = vmatpush1.msra.mxu0 0.0
    %1155 = vmatprep.subr.mxu0 0.0
    %1156 = vmatpush1.msra.mxu0 0.0
    %1157 = vmatprep.subr.mxu0 0.0
    %1158 = vmatpush1.msra.mxu0 0.0
    %1159 = vmatprep.subr.mxu0 0.0
    %1160 = vmatpush1.msra.mxu0 0.0
    %1161 = vmatprep.subr.mxu0 0.0
    %1162 = vmatpush1.msra.mxu0 0.0
    %1163 = vmatprep.mubr.f32.mxu0 0.0
    %1164 = vmatmul.mubr.f32.gmra.mrb[0].mxu0 %v1097
    %v1165 = vpop.f32.mrb[0].mxu0
    %v1166 = vadd.f32 0.0, %v1165
    %v1167 = vpop.f32.mrb[0].mxu0
    %1168 = vdwg.mxu0
    %v1169 = vsel %vm468, %v567, 0
    %1171 = vmatprep.subr.mxu0 0.0
    %1172 = vmatpush1.msra.mxu0 %v57
    %1173 = vmatprep.subr.mxu0 0.0
    %1174 = vmatpush1.msra.mxu0 0.0
    %1175 = vmatprep.subr.mxu0 0.0
    %1176 = vmatpush1.msra.mxu0 0.0
    %1177 = vmatprep.subr.mxu0 0.0
    %1178 = vmatpush1.msra.mxu0 0.0
    %1179 = vmatprep.subr.mxu0 0.0
    %1180 = vmatpush1.msra.mxu0 0.0
    %1181 = vmatprep.subr.mxu0 0.0
    %1182 = vmatpush1.msra.mxu0 0.0
    %1183 = vmatprep.subr.mxu0 0.0
    %1184 = vmatpush1.msra.mxu0 0.0
    %1185 = vmatprep.subr.mxu0 0.0
    %1186 = vmatpush1.msra.mxu0 0.0
    %1187 = vmatprep.subr.mxu0 0.0
    %1188 = vmatpush1.msra.mxu0 0.0
    %1189 = vmatprep.subr.mxu0 0.0
    %1190 = vmatpush1.msra.mxu0 0.0
    %1191 = vmatprep.subr.mxu0 0.0
    %1192 = vmatpush1.msra.mxu0 0.0
    %1193 = vmatprep.subr.mxu0 0.0
    %1194 = vmatpush1.msra.mxu0 0.0
    %1195 = vmatprep.subr.mxu0 0.0
    %1196 = vmatpush1.msra.mxu0 0.0
    %1197 = vmatprep.subr.mxu0 0.0
    %1198 = vmatpush1.msra.mxu0 0.0
    %1199 = vmatprep.subr.mxu0 0.0
    %1200 = vmatpush1.msra.mxu0 0.0
    %1201 = vmatprep.subr.mxu0 0.0
    %1202 = vmatpush1.msra.mxu0 0.0
    %1203 = vmatprep.subr.mxu0 0.0
    %1204 = vmatpush1.msra.mxu0 0.0
    %1205 = vmatprep.subr.mxu0 0.0
    %1206 = vmatpush1.msra.mxu0 0.0
    %1207 = vmatprep.subr.mxu0 0.0
    %1208 = vmatpush1.msra.mxu0 0.0
    %1209 = vmatprep.subr.mxu0 0.0
    %1210 = vmatpush1.msra.mxu0 0.0
    %1211 = vmatprep.subr.mxu0 0.0
    %1212 = vmatpush1.msra.mxu0 0.0
    %1213 = vmatprep.subr.mxu0 0.0
    %1214 = vmatpush1.msra.mxu0 0.0
    %1215 = vmatprep.subr.mxu0 0.0
    %1216 = vmatpush1.msra.mxu0 0.0
    %1217 = vmatprep.subr.mxu0 0.0
    %1218 = vmatpush1.msra.mxu0 0.0
    %1219 = vmatprep.subr.mxu0 0.0
    %1220 = vmatpush1.msra.mxu0 0.0
    %1221 = vmatprep.subr.mxu0 0.0
    %1222 = vmatpush1.msra.mxu0 0.0
    %1223 = vmatprep.subr.mxu0 0.0
    %1224 = vmatpush1.msra.mxu0 0.0
    %1225 = vmatprep.subr.mxu0 0.0
    %1226 = vmatpush1.msra.mxu0 0.0
    %1227 = vmatprep.subr.mxu0 0.0
    %1228 = vmatpush1.msra.mxu0 0.0
    %1229 = vmatprep.subr.mxu0 0.0
    %1230 = vmatpush1.msra.mxu0 0.0
    %1231 = vmatprep.subr.mxu0 0.0
    %1232 = vmatpush1.msra.mxu0 0.0
    %1233 = vmatprep.subr.mxu0 0.0
    %1234 = vmatpush1.msra.mxu0 0.0
    %1235 = vmatprep.mubr.f32.mxu0 0.0
    %1236 = vmatmul.mubr.f32.gmra.mrb[0].mxu0 %v1169
    %v1237 = vpop.f32.mrb[0].mxu0
    %v1238 = vadd.f32 0.0, %v1237
    %v1239 = vpop.f32.mrb[0].mxu0
    %1240 = vdwg.mxu0
    %v1241 = vsel %vm468, %v581, 0
    %1243 = vmatprep.subr.mxu0 0.0
    %1244 = vmatpush1.msra.mxu0 %v58
    %1245 = vmatprep.subr.mxu0 0.0
    %1246 = vmatpush1.msra.mxu0 0.0
    %1247 = vmatprep.subr.mxu0 0.0
    %1248 = vmatpush1.msra.mxu0 0.0
    %1249 = vmatprep.subr.mxu0 0.0
    %1250 = vmatpush1.msra.mxu0 0.0
    %1251 = vmatprep.subr.mxu0 0.0
    %1252 = vmatpush1.msra.mxu0 0.0
    %1253 = vmatprep.subr.mxu0 0.0
    %1254 = vmatpush1.msra.mxu0 0.0
    %1255 = vmatprep.subr.mxu0 0.0
    %1256 = vmatpush1.msra.mxu0 0.0
    %1257 = vmatprep.subr.mxu0 0.0
    %1258 = vmatpush1.msra.mxu0 0.0
    %1259 = vmatprep.subr.mxu0 0.0
    %1260 = vmatpush1.msra.mxu0 0.0
    %1261 = vmatprep.subr.mxu0 0.0
    %1262 = vmatpush1.msra.mxu0 0.0
    %1263 = vmatprep.subr.mxu0 0.0
    %1264 = vmatpush1.msra.mxu0 0.0
    %1265 = vmatprep.subr.mxu0 0.0
    %1266 = vmatpush1.msra.mxu0 0.0
    %1267 = vmatprep.subr.mxu0 0.0
    %1268 = vmatpush1.msra.mxu0 0.0
    %1269 = vmatprep.subr.mxu0 0.0
    %1270 = vmatpush1.msra.mxu0 0.0
    %1271 = vmatprep.subr.mxu0 0.0
    %1272 = vmatpush1.msra.mxu0 0.0
    %1273 = vmatprep.subr.mxu0 0.0
    %1274 = vmatpush1.msra.mxu0 0.0
    %1275 = vmatprep.subr.mxu0 0.0
    %1276 = vmatpush1.msra.mxu0 0.0
    %1277 = vmatprep.subr.mxu0 0.0
    %1278 = vmatpush1.msra.mxu0 0.0
    %1279 = vmatprep.subr.mxu0 0.0
    %1280 = vmatpush1.msra.mxu0 0.0
    %1281 = vmatprep.subr.mxu0 0.0
    %1282 = vmatpush1.msra.mxu0 0.0
    %1283 = vmatprep.subr.mxu0 0.0
    %1284 = vmatpush1.msra.mxu0 0.0
    %1285 = vmatprep.subr.mxu0 0.0
    %1286 = vmatpush1.msra.mxu0 0.0
    %1287 = vmatprep.subr.mxu0 0.0
    %1288 = vmatpush1.msra.mxu0 0.0
    %1289 = vmatprep.subr.mxu0 0.0
    %1290 = vmatpush1.msra.mxu0 0.0
    %1291 = vmatprep.subr.mxu0 0.0
    %1292 = vmatpush1.msra.mxu0 0.0
    %1293 = vmatprep.subr.mxu0 0.0
    %1294 = vmatpush1.msra.mxu0 0.0
    %1295 = vmatprep.subr.mxu0 0.0
    %1296 = vmatpush1.msra.mxu0 0.0
    %1297 = vmatprep.subr.mxu0 0.0
    %1298 = vmatpush1.msra.mxu0 0.0
    %1299 = vmatprep.subr.mxu0 0.0
    %1300 = vmatpush1.msra.mxu0 0.0
    %1301 = vmatprep.subr.mxu0 0.0
    %1302 = vmatpush1.msra.mxu0 0.0
    %1303 = vmatprep.subr.mxu0 0.0
    %1304 = vmatpush1.msra.mxu0 0.0
    %1305 = vmatprep.subr.mxu0 0.0
    %1306 = vmatpush1.msra.mxu0 0.0
    %1307 = vmatprep.mubr.f32.mxu0 0.0
    %1308 = vmatmul.mubr.f32.gmra.mrb[0].mxu0 %v1241
    %v1309 = vpop.f32.mrb[0].mxu0
    %v1310 = vadd.f32 0.0, %v1309
    %v1311 = vpop.f32.mrb[0].mxu0
    %1312 = vdwg.mxu0
    %v1313 = vsel %vm468, %v589, 0
    %1315 = vmatprep.subr.mxu0 0.0
    %1316 = vmatpush1.msra.mxu0 %v59
    %1317 = vmatprep.subr.mxu0 0.0
    %1318 = vmatpush1.msra.mxu0 0.0
    %1319 = vmatprep.subr.mxu0 0.0
    %1320 = vmatpush1.msra.mxu0 0.0
    %1321 = vmatprep.subr.mxu0 0.0
    %1322 = vmatpush1.msra.mxu0 0.0
    %1323 = vmatprep.subr.mxu0 0.0
    %1324 = vmatpush1.msra.mxu0 0.0
    %1325 = vmatprep.subr.mxu0 0.0
    %1326 = vmatpush1.msra.mxu0 0.0
    %1327 = vmatprep.subr.mxu0 0.0
    %1328 = vmatpush1.msra.mxu0 0.0
    %1329 = vmatprep.subr.mxu0 0.0
    %1330 = vmatpush1.msra.mxu0 0.0
    %1331 = vmatprep.subr.mxu0 0.0
    %1332 = vmatpush1.msra.mxu0 0.0
    %1333 = vmatprep.subr.mxu0 0.0
    %1334 = vmatpush1.msra.mxu0 0.0
    %1335 = vmatprep.subr.mxu0 0.0
    %1336 = vmatpush1.msra.mxu0 0.0
    %1337 = vmatprep.subr.mxu0 0.0
    %1338 = vmatpush1.msra.mxu0 0.0
    %1339 = vmatprep.subr.mxu0 0.0
    %1340 = vmatpush1.msra.mxu0 0.0
    %1341 = vmatprep.subr.mxu0 0.0
    %1342 = vmatpush1.msra.mxu0 0.0
    %1343 = vmatprep.subr.mxu0 0.0
    %1344 = vmatpush1.msra.mxu0 0.0
    %1345 = vmatprep.subr.mxu0 0.0
    %1346 = vmatpush1.msra.mxu0 0.0
    %1347 = vmatprep.subr.mxu0 0.0
    %1348 = vmatpush1.msra.mxu0 0.0
    %1349 = vmatprep.subr.mxu0 0.0
    %1350 = vmatpush1.msra.mxu0 0.0
    %1351 = vmatprep.subr.mxu0 0.0
    %1352 = vmatpush1.msra.mxu0 0.0
    %1353 = vmatprep.subr.mxu0 0.0
    %1354 = vmatpush1.msra.mxu0 0.0
    %1355 = vmatprep.subr.mxu0 0.0
    %1356 = vmatpush1.msra.mxu0 0.0
    %1357 = vmatprep.subr.mxu0 0.0
    %1358 = vmatpush1.msra.mxu0 0.0
    %1359 = vmatprep.subr.mxu0 0.0
    %1360 = vmatpush1.msra.mxu0 0.0
    %1361 = vmatprep.subr.mxu0 0.0
    %1362 = vmatpush1.msra.mxu0 0.0
    %1363 = vmatprep.subr.mxu0 0.0
    %1364 = vmatpush1.msra.mxu0 0.0
    %1365 = vmatprep.subr.mxu0 0.0
    %1366 = vmatpush1.msra.mxu0 0.0
    %1367 = vmatprep.subr.mxu0 0.0
    %1368 = vmatpush1.msra.mxu0 0.0
    %1369 = vmatprep.subr.mxu0 0.0
    %1370 = vmatpush1.msra.mxu0 0.0
    %1371 = vmatprep.subr.mxu0 0.0
    %1372 = vmatpush1.msra.mxu0 0.0
    %1373 = vmatprep.subr.mxu0 0.0
    %1374 = vmatpush1.msra.mxu0 0.0
    %1375 = vmatprep.subr.mxu0 0.0
    %1376 = vmatpush1.msra.mxu0 0.0
    %1377 = vmatprep.subr.mxu0 0.0
    %1378 = vmatpush1.msra.mxu0 0.0
    %1379 = vmatprep.mubr.f32.mxu0 0.0
    %1380 = vmatmul.mubr.f32.gmra.mrb[0].mxu0 %v1313
    %v1381 = vpop.f32.mrb[0].mxu0
    %v1382 = vadd.f32 0.0, %v1381
    %v1383 = vpop.f32.mrb[0].mxu0
    %1384 = vdwg.mxu0
    %v1385 = vsel %vm468, %v591, 0
    %1387 = vmatprep.subr.mxu0 0.0
    %1388 = vmatpush1.msra.mxu0 %v60
    %1389 = vmatprep.subr.mxu0 0.0
    %1390 = vmatpush1.msra.mxu0 0.0
    %1391 = vmatprep.subr.mxu0 0.0
    %1392 = vmatpush1.msra.mxu0 0.0
    %1393 = vmatprep.subr.mxu0 0.0
    %1394 = vmatpush1.msra.mxu0 0.0
    %1395 = vmatprep.subr.mxu0 0.0
    %1396 = vmatpush1.msra.mxu0 0.0
    %1397 = vmatprep.subr.mxu0 0.0
    %1398 = vmatpush1.msra.mxu0 0.0
    %1399 = vmatprep.subr.mxu0 0.0
    %1400 = vmatpush1.msra.mxu0 0.0
    %1401 = vmatprep.subr.mxu0 0.0
    %1402 = vmatpush1.msra.mxu0 0.0
    %1403 = vmatprep.subr.mxu0 0.0
    %1404 = vmatpush1.msra.mxu0 0.0
    %1405 = vmatprep.subr.mxu0 0.0
    %1406 = vmatpush1.msra.mxu0 0.0
    %1407 = vmatprep.subr.mxu0 0.0
    %1408 = vmatpush1.msra.mxu0 0.0
    %1409 = vmatprep.subr.mxu0 0.0
    %1410 = vmatpush1.msra.mxu0 0.0
    %1411 = vmatprep.subr.mxu0 0.0
    %1412 = vmatpush1.msra.mxu0 0.0
    %1413 = vmatprep.subr.mxu0 0.0
    %1414 = vmatpush1.msra.mxu0 0.0
    %1415 = vmatprep.subr.mxu0 0.0
    %1416 = vmatpush1.msra.mxu0 0.0
    %1417 = vmatprep.subr.mxu0 0.0
    %1418 = vmatpush1.msra.mxu0 0.0
    %1419 = vmatprep.subr.mxu0 0.0
    %1420 = vmatpush1.msra.mxu0 0.0
    %1421 = vmatprep.subr.mxu0 0.0
    %1422 = vmatpush1.msra.mxu0 0.0
    %1423 = vmatprep.subr.mxu0 0.0
    %1424 = vmatpush1.msra.mxu0 0.0
    %1425 = vmatprep.subr.mxu0 0.0
    %1426 = vmatpush1.msra.mxu0 0.0
    %1427 = vmatprep.subr.mxu0 0.0
    %1428 = vmatpush1.msra.mxu0 0.0
    %1429 = vmatprep.subr.mxu0 0.0
    %1430 = vmatpush1.msra.mxu0 0.0
    %1431 = vmatprep.subr.mxu0 0.0
    %1432 = vmatpush1.msra.mxu0 0.0
    %1433 = vmatprep.subr.mxu0 0.0
    %1434 = vmatpush1.msra.mxu0 0.0
    %1435 = vmatprep.subr.mxu0 0.0
    %1436 = vmatpush1.msra.mxu0 0.0
    %1437 = vmatprep.subr.mxu0 0.0
    %1438 = vmatpush1.msra.mxu0 0.0
    %1439 = vmatprep.subr.mxu0 0.0
    %1440 = vmatpush1.msra.mxu0 0.0
    %1441 = vmatprep.subr.mxu0 0.0
    %1442 = vmatpush1.msra.mxu0 0.0
    %1443 = vmatprep.subr.mxu0 0.0
    %1444 = vmatpush1.msra.mxu0 0.0
    %1445 = vmatprep.subr.mxu0 0.0
    %1446 = vmatpush1.msra.mxu0 0.0
    %1447 = vmatprep.subr.mxu0 0.0
    %1448 = vmatpush1.msra.mxu0 0.0
    %1449 = vmatprep.subr.mxu0 0.0
    %1450 = vmatpush1.msra.mxu0 0.0
    %1451 = vmatprep.mubr.f32.mxu0 0.0
    %1452 = vmatmul.mubr.f32.gmra.mrb[0].mxu0 %v1385
    %v1453 = vpop.f32.mrb[0].mxu0
    %v1454 = vadd.f32 0.0, %v1453
    %v1455 = vpop.f32.mrb[0].mxu0
    %1456 = vdwg.mxu0
    %v1457 = vsel %vm468, %v574, 0
    %1459 = vmatprep.subr.mxu0 0.0
    %1460 = vmatpush1.msra.mxu0 %v61
    %1461 = vmatprep.subr.mxu0 0.0
    %1462 = vmatpush1.msra.mxu0 0.0
    %1463 = vmatprep.subr.mxu0 0.0
    %1464 = vmatpush1.msra.mxu0 0.0
    %1465 = vmatprep.subr.mxu0 0.0
    %1466 = vmatpush1.msra.mxu0 0.0
    %1467 = vmatprep.subr.mxu0 0.0
    %1468 = vmatpush1.msra.mxu0 0.0
    %1469 = vmatprep.subr.mxu0 0.0
    %1470 = vmatpush1.msra.mxu0 0.0
    %1471 = vmatprep.subr.mxu0 0.0
    %1472 = vmatpush1.msra.mxu0 0.0
    %1473 = vmatprep.subr.mxu0 0.0
    %1474 = vmatpush1.msra.mxu0 0.0
    %1475 = vmatprep.subr.mxu0 0.0
    %1476 = vmatpush1.msra.mxu0 0.0
    %1477 = vmatprep.subr.mxu0 0.0
    %1478 = vmatpush1.msra.mxu0 0.0
    %1479 = vmatprep.subr.mxu0 0.0
    %1480 = vmatpush1.msra.mxu0 0.0
    %1481 = vmatprep.subr.mxu0 0.0
    %1482 = vmatpush1.msra.mxu0 0.0
    %1483 = vmatprep.subr.mxu0 0.0
    %1484 = vmatpush1.msra.mxu0 0.0
    %1485 = vmatprep.subr.mxu0 0.0
    %1486 = vmatpush1.msra.mxu0 0.0
    %1487 = vmatprep.subr.mxu0 0.0
    %1488 = vmatpush1.msra.mxu0 0.0
    %1489 = vmatprep.subr.mxu0 0.0
    %1490 = vmatpush1.msra.mxu0 0.0
    %1491 = vmatprep.subr.mxu0 0.0
    %1492 = vmatpush1.msra.mxu0 0.0
    %1493 = vmatprep.subr.mxu0 0.0
    %1494 = vmatpush1.msra.mxu0 0.0
    %1495 = vmatprep.subr.mxu0 0.0
    %1496 = vmatpush1.msra.mxu0 0.0
    %1497 = vmatprep.subr.mxu0 0.0
    %1498 = vmatpush1.msra.mxu0 0.0
    %1499 = vmatprep.subr.mxu0 0.0
    %1500 = vmatpush1.msra.mxu0 0.0
    %1501 = vmatprep.subr.mxu0 0.0
    %1502 = vmatpush1.msra.mxu0 0.0
    %1503 = vmatprep.subr.mxu0 0.0
    %1504 = vmatpush1.msra.mxu0 0.0
    %1505 = vmatprep.subr.mxu0 0.0
    %1506 = vmatpush1.msra.mxu0 0.0
    %1507 = vmatprep.subr.mxu0 0.0
    %1508 = vmatpush1.msra.mxu0 0.0
    %1509 = vmatprep.subr.mxu0 0.0
    %1510 = vmatpush1.msra.mxu0 0.0
    %1511 = vmatprep.subr.mxu0 0.0
    %1512 = vmatpush1.msra.mxu0 0.0
    %1513 = vmatprep.subr.mxu0 0.0
    %1514 = vmatpush1.msra.mxu0 0.0
    %1515 = vmatprep.subr.mxu0 0.0
    %1516 = vmatpush1.msra.mxu0 0.0
    %1517 = vmatprep.subr.mxu0 0.0
    %1518 = vmatpush1.msra.mxu0 0.0
    %1519 = vmatprep.subr.mxu0 0.0
    %1520 = vmatpush1.msra.mxu0 0.0
    %1521 = vmatprep.subr.mxu0 0.0
    %1522 = vmatpush1.msra.mxu0 0.0
    %1523 = vmatprep.mubr.f32.mxu0 0.0
    %1524 = vmatmul.mubr.f32.gmra.mrb[0].mxu0 %v1457
    %v1525 = vpop.f32.mrb[0].mxu0
    %v1526 = vadd.f32 0.0, %v1525
    %v1527 = vpop.f32.mrb[0].mxu0
    %1528 = vdwg.mxu0
    %v1529 = vsel %vm468, %v588, 0
    %1531 = vmatprep.subr.mxu0 0.0
    %1532 = vmatpush1.msra.mxu0 %v62
    %1533 = vmatprep.subr.mxu0 0.0
    %1534 = vmatpush1.msra.mxu0 0.0
    %1535 = vmatprep.subr.mxu0 0.0
    %1536 = vmatpush1.msra.mxu0 0.0
    %1537 = vmatprep.subr.mxu0 0.0
    %1538 = vmatpush1.msra.mxu0 0.0
    %1539 = vmatprep.subr.mxu0 0.0
    %1540 = vmatpush1.msra.mxu0 0.0
    %1541 = vmatprep.subr.mxu0 0.0
    %1542 = vmatpush1.msra.mxu0 0.0
    %1543 = vmatprep.subr.mxu0 0.0
    %1544 = vmatpush1.msra.mxu0 0.0
    %1545 = vmatprep.subr.mxu0 0.0
    %1546 = vmatpush1.msra.mxu0 0.0
    %1547 = vmatprep.subr.mxu0 0.0
    %1548 = vmatpush1.msra.mxu0 0.0
    %1549 = vmatprep.subr.mxu0 0.0
    %1550 = vmatpush1.msra.mxu0 0.0
    %1551 = vmatprep.subr.mxu0 0.0
    %1552 = vmatpush1.msra.mxu0 0.0
    %1553 = vmatprep.subr.mxu0 0.0
    %1554 = vmatpush1.msra.mxu0 0.0
    %1555 = vmatprep.subr.mxu0 0.0
    %1556 = vmatpush1.msra.mxu0 0.0
    %1557 = vmatprep.subr.mxu0 0.0
    %1558 = vmatpush1.msra.mxu0 0.0
    %1559 = vmatprep.subr.mxu0 0.0
    %1560 = vmatpush1.msra.mxu0 0.0
    %1561 = vmatprep.subr.mxu0 0.0
    %1562 = vmatpush1.msra.mxu0 0.0
    %1563 = vmatprep.subr.mxu0 0.0
    %1564 = vmatpush1.msra.mxu0 0.0
    %1565 = vmatprep.subr.mxu0 0.0
    %1566 = vmatpush1.msra.mxu0 0.0
    %1567 = vmatprep.subr.mxu0 0.0
    %1568 = vmatpush1.msra.mxu0 0.0
    %1569 = vmatprep.subr.mxu0 0.0
    %1570 = vmatpush1.msra.mxu0 0.0
    %1571 = vmatprep.subr.mxu0 0.0
    %1572 = vmatpush1.msra.mxu0 0.0
    %1573 = vmatprep.subr.mxu0 0.0
    %1574 = vmatpush1.msra.mxu0 0.0
    %1575 = vmatprep.subr.mxu0 0.0
    %1576 = vmatpush1.msra.mxu0 0.0
    %1577 = vmatprep.subr.mxu0 0.0
    %1578 = vmatpush1.msra.mxu0 0.0
    %1579 = vmatprep.subr.mxu0 0.0
    %1580 = vmatpush1.msra.mxu0 0.0
    %1581 = vmatprep.subr.mxu0 0.0
    %1582 = vmatpush1.msra.mxu0 0.0
    %1583 = vmatprep.subr.mxu0 0.0
    %1584 = vmatpush1.msra.mxu0 0.0
    %1585 = vmatprep.subr.mxu0 0.0
    %1586 = vmatpush1.msra.mxu0 0.0
    %1587 = vmatprep.subr.mxu0 0.0
    %1588 = vmatpush1.msra.mxu0 0.0
    %1589 = vmatprep.subr.mxu0 0.0
    %1590 = vmatpush1.msra.mxu0 0.0
    %1591 = vmatprep.subr.mxu0 0.0
    %1592 = vmatpush1.msra.mxu0 0.0
    %1593 = vmatprep.subr.mxu0 0.0
    %1594 = vmatpush1.msra.mxu0 0.0
    %1595 = vmatprep.mubr.f32.mxu0 0.0
    %1596 = vmatmul.mubr.f32.gmra.mrb[0].mxu0 %v1529
    %v1597 = vpop.f32.mrb[0].mxu0
    %v1598 = vadd.f32 0.0, %v1597
    %v1599 = vpop.f32.mrb[0].mxu0
    %1600 = vdwg.mxu0
    %v1601 = vsel %vm468, %v590, 0
    %1603 = vmatprep.subr.mxu0 0.0
    %1604 = vmatpush1.msra.mxu0 %v63
    %1605 = vmatprep.subr.mxu0 0.0
    %1606 = vmatpush1.msra.mxu0 0.0
    %1607 = vmatprep.subr.mxu0 0.0
    %1608 = vmatpush1.msra.mxu0 0.0
    %1609 = vmatprep.subr.mxu0 0.0
    %1610 = vmatpush1.msra.mxu0 0.0
    %1611 = vmatprep.subr.mxu0 0.0
    %1612 = vmatpush1.msra.mxu0 0.0
    %1613 = vmatprep.subr.mxu0 0.0
    %1614 = vmatpush1.msra.mxu0 0.0
    %1615 = vmatprep.subr.mxu0 0.0
    %1616 = vmatpush1.msra.mxu0 0.0
    %1617 = vmatprep.subr.mxu0 0.0
    %1618 = vmatpush1.msra.mxu0 0.0
    %1619 = vmatprep.subr.mxu0 0.0
    %1620 = vmatpush1.msra.mxu0 0.0
    %1621 = vmatprep.subr.mxu0 0.0
    %1622 = vmatpush1.msra.mxu0 0.0
    %1623 = vmatprep.subr.mxu0 0.0
    %1624 = vmatpush1.msra.mxu0 0.0
    %1625 = vmatprep.subr.mxu0 0.0
    %1626 = vmatpush1.msra.mxu0 0.0
    %1627 = vmatprep.subr.mxu0 0.0
    %1628 = vmatpush1.msra.mxu0 0.0
    %1629 = vmatprep.subr.mxu0 0.0
    %1630 = vmatpush1.msra.mxu0 0.0
    %1631 = vmatprep.subr.mxu0 0.0
    %1632 = vmatpush1.msra.mxu0 0.0
    %1633 = vmatprep.subr.mxu0 0.0
    %1634 = vmatpush1.msra.mxu0 0.0
    %1635 = vmatprep.subr.mxu0 0.0
    %1636 = vmatpush1.msra.mxu0 0.0
    %1637 = vmatprep.subr.mxu0 0.0
    %1638 = vmatpush1.msra.mxu0 0.0
    %1639 = vmatprep.subr.mxu0 0.0
    %1640 = vmatpush1.msra.mxu0 0.0
    %1641 = vmatprep.subr.mxu0 0.0
    %1642 = vmatpush1.msra.mxu0 0.0
    %1643 = vmatprep.subr.mxu0 0.0
    %1644 = vmatpush1.msra.mxu0 0.0
    %1645 = vmatprep.subr.mxu0 0.0
    %1646 = vmatpush1.msra.mxu0 0.0
    %1647 = vmatprep.subr.mxu0 0.0
    %1648 = vmatpush1.msra.mxu0 0.0
    %1649 = vmatprep.subr.mxu0 0.0
    %1650 = vmatpush1.msra.mxu0 0.0
    %1651 = vmatprep.subr.mxu0 0.0
    %1652 = vmatpush1.msra.mxu0 0.0
    %1653 = vmatprep.subr.mxu0 0.0
    %1654 = vmatpush1.msra.mxu0 0.0
    %1655 = vmatprep.subr.mxu0 0.0
    %1656 = vmatpush1.msra.mxu0 0.0
    %1657 = vmatprep.subr.mxu0 0.0
    %1658 = vmatpush1.msra.mxu0 0.0
    %1659 = vmatprep.subr.mxu0 0.0
    %1660 = vmatpush1.msra.mxu0 0.0
    %1661 = vmatprep.subr.mxu0 0.0
    %1662 = vmatpush1.msra.mxu0 0.0
    %1663 = vmatprep.subr.mxu0 0.0
    %1664 = vmatpush1.msra.mxu0 0.0
    %1665 = vmatprep.subr.mxu0 0.0
    %1666 = vmatpush1.msra.mxu0 0.0
    %1667 = vmatprep.mubr.f32.mxu0 0.0
    %1668 = vmatmul.mubr.f32.gmra.mrb[0].mxu0 %v1601
    %v1669 = vpop.f32.mrb[0].mxu0
    %v1670 = vadd.f32 0.0, %v1669
    %v1671 = vpop.f32.mrb[0].mxu0
    %1672 = vdwg.mxu0
    %v1673 = vsel %vm468, %v592, 0
    %1675 = vmatprep.subr.mxu0 0.0
    %1676 = vmatpush1.msra.mxu0 %v64
    %1677 = vmatprep.subr.mxu0 0.0
    %1678 = vmatpush1.msra.mxu0 0.0
    %1679 = vmatprep.subr.mxu0 0.0
    %1680 = vmatpush1.msra.mxu0 0.0
    %1681 = vmatprep.subr.mxu0 0.0
    %1682 = vmatpush1.msra.mxu0 0.0
    %1683 = vmatprep.subr.mxu0 0.0
    %1684 = vmatpush1.msra.mxu0 0.0
    %1685 = vmatprep.subr.mxu0 0.0
    %1686 = vmatpush1.msra.mxu0 0.0
    %1687 = vmatprep.subr.mxu0 0.0
    %1688 = vmatpush1.msra.mxu0 0.0
    %1689 = vmatprep.subr.mxu0 0.0
    %1690 = vmatpush1.msra.mxu0 0.0
    %1691 = vmatprep.subr.mxu0 0.0
    %1692 = vmatpush1.msra.mxu0 0.0
    %1693 = vmatprep.subr.mxu0 0.0
    %1694 = vmatpush1.msra.mxu0 0.0
    %1695 = vmatprep.subr.mxu0 0.0
    %1696 = vmatpush1.msra.mxu0 0.0
    %1697 = vmatprep.subr.mxu0 0.0
    %1698 = vmatpush1.msra.mxu0 0.0
    %1699 = vmatprep.subr.mxu0 0.0
    %1700 = vmatpush1.msra.mxu0 0.0
    %1701 = vmatprep.subr.mxu0 0.0
    %1702 = vmatpush1.msra.mxu0 0.0
    %1703 = vmatprep.subr.mxu0 0.0
    %1704 = vmatpush1.msra.mxu0 0.0
    %1705 = vmatprep.subr.mxu0 0.0
    %1706 = vmatpush1.msra.mxu0 0.0
    %1707 = vmatprep.subr.mxu0 0.0
    %1708 = vmatpush1.msra.mxu0 0.0
    %1709 = vmatprep.subr.mxu0 0.0
    %1710 = vmatpush1.msra.mxu0 0.0
    %1711 = vmatprep.subr.mxu0 0.0
    %1712 = vmatpush1.msra.mxu0 0.0
    %1713 = vmatprep.subr.mxu0 0.0
    %1714 = vmatpush1.msra.mxu0 0.0
    %1715 = vmatprep.subr.mxu0 0.0
    %1716 = vmatpush1.msra.mxu0 0.0
    %1717 = vmatprep.subr.mxu0 0.0
    %1718 = vmatpush1.msra.mxu0 0.0
    %1719 = vmatprep.subr.mxu0 0.0
    %1720 = vmatpush1.msra.mxu0 0.0
    %1721 = vmatprep.subr.mxu0 0.0
    %1722 = vmatpush1.msra.mxu0 0.0
    %1723 = vmatprep.subr.mxu0 0.0
    %1724 = vmatpush1.msra.mxu0 0.0
    %1725 = vmatprep.subr.mxu0 0.0
    %1726 = vmatpush1.msra.mxu0 0.0
    %1727 = vmatprep.subr.mxu0 0.0
    %1728 = vmatpush1.msra.mxu0 0.0
    %1729 = vmatprep.subr.mxu0 0.0
    %1730 = vmatpush1.msra.mxu0 0.0
    %1731 = vmatprep.subr.mxu0 0.0
    %1732 = vmatpush1.msra.mxu0 0.0
    %1733 = vmatprep.subr.mxu0 0.0
    %1734 = vmatpush1.msra.mxu0 0.0
    %1735 = vmatprep.subr.mxu0 0.0
    %1736 = vmatpush1.msra.mxu0 0.0
    %1737 = vmatprep.subr.mxu0 0.0
    %1738 = vmatpush1.msra.mxu0 0.0
    %1739 = vmatprep.mubr.f32.mxu0 0.0
    %1740 = vmatmul.mubr.f32.gmra.mrb[0].mxu0 %v1673
    %v1741 = vpop.f32.mrb[0].mxu0
    %v1742 = vadd.f32 0.0, %v1741
    %v1743 = vpop.f32.mrb[0].mxu0
    %1744 = vdwg.mxu0
    %v1761 = vrot.slane %v734, 7
    %v1762 = vsel %vm443, %v1761, %v662
    %v1763 = vrot.slane %v806, 6
    %v1764 = vsel %vm445, %v1763, %v1762
    %v1765 = vrot.slane %v878, 5
    %v1766 = vsel %vm447, %v1765, %v1764
    %v1767 = vrot.slane %v950, 4
    %v1768 = vsel %vm449, %v1767, %v1766
    %v1769 = vrot.slane %v1022, 3
    %v1770 = vsel %vm451, %v1769, %v1768
    %v1771 = vrot.slane %v1094, 2
    %v1772 = vsel %vm453, %v1771, %v1770
    %v1773 = vrot.slane %v1166, 1
    %v1774 = vsel %vm455, %v1773, %v1772
    %v1775 = vrot.slane %v1310, 7
    %v1776 = vsel %vm443, %v1775, %v1238
    %v1777 = vrot.slane %v1382, 6
    %v1778 = vsel %vm445, %v1777, %v1776
    %v1779 = vrot.slane %v1454, 5
    %v1780 = vsel %vm447, %v1779, %v1778
    %v1781 = vrot.slane %v1526, 4
    %v1782 = vsel %vm449, %v1781, %v1780
    %v1783 = vrot.slane %v1598, 3
    %v1784 = vsel %vm451, %v1783, %v1782
    %v1785 = vrot.slane %v1670, 2
    %v1786 = vsel %vm453, %v1785, %v1784
    %v1787 = vrot.slane %v1742, 1
    %v1788 = vsel %vm455, %v1787, %v1786
    %1791 = vst.msk [vmem:[#allocation7] sm:$0xff] %vm76, %v1774
    %1792 = vst.msk [vmem:[#allocation7 + $0x8] sm:$0xff] %vm76, %v1788
    // Predicated region
    $region30: #{tpu_custom_call.1} parent=1 // pred_check
      _
    $region31: #{tpu_custom_call.1} parent=1 // pred_check_branch
      %1794 = sbr.rel (0) target = $region33
    $region32: #{tpu_custom_call.1} parent=1 // pred_region
      %s1796 = ssub.s32 256, 256
      %1797 = vsyncadd [#allocation4], %s1796
      %s1798 = sshll.u32 [#allocation7], 4
      %s1799 = int_to_ptr.vmem [resolvable:$true] %s1798
      %1804 = dma.vmem_to_hbm [thread:$0]  %s1799, 256, %s5, [#allocation4], 128, 128, 8
    $region33: #{tpu_custom_call.1} parent=1 // pred_fallthru
      _
    // Predicated region
    $region34: #{tpu_custom_call.1} parent=1 // pred_check
      _
    $region35: #{tpu_custom_call.1} parent=1 // pred_check_branch
      %1806 = sbr.rel (0) target = $region37
    $region36: #{tpu_custom_call.1} parent=1 // pred_region
      %1807 = dma.done [#allocation4], 256
    $region37: #{tpu_custom_call.1} parent=1 // pred_fallthru
      _
    %1808 = vsyncpa [#allocation3], 1
    %1809 = vsyncpa [#allocation6], 1
    %1810 = vsyncpa [#allocation4], 1

</llo_original>
